<compile_context>
chip_gen: v7x
topology: tpu7x:2x2x1
jax: 0.10.0
libtpu: 0.0.40
codegen_flags: <defaults>
</compile_context>

<pallas_src>
import jax
import jax.numpy as jnp
from jax import lax
from jax.experimental import pallas as pl
from jax.experimental.pallas import tpu as pltpu

D_MODEL = 128            # lane-dense hidden size (one full vreg lane width)
D_FF = 256
VOCAB = 128              # lane-dense LM head (no padding / slicing needed)
PATCH = 4
IMG_C = 3
PD_PAD = 128             # patch feature dim (C*ph*pw = 48) padded to 128 lanes
MAX_POS = 64
NEG_INF = -1e9
SCALE = 1.0 / (D_MODEL ** 0.5)


# ---------------------------------------------------------------------------
# In-kernel helpers
# ---------------------------------------------------------------------------
def _bf16(x):
    return x.astype(jnp.bfloat16)


def _softmax(s):
    m = jnp.max(s, axis=-1, keepdims=True)
    e = jnp.exp(s - m)
    return e * pl.reciprocal(jnp.sum(e, axis=-1, keepdims=True), approx=True)


def _layer_norm(h, gamma, beta):
    mu = jnp.mean(h, axis=-1, keepdims=True)
    var = jnp.mean((h - mu) ** 2, axis=-1, keepdims=True)
    return (h - mu) * lax.rsqrt(var + 1e-5) * gamma + beta


# ---------------------------------------------------------------------------
# Fused RRG kernel: encoder + decoder layer + LM head, one batch per grid step
# ---------------------------------------------------------------------------
def _rrg_kernel(patch_ref, x_ref, amask_ref, cmask_ref,
                wp_ref, wqkv_ref, wo_ref,
                wq2_ref, wkv2_ref, wo2_ref,
                wf1_ref, bf1_ref, wf2_ref,
                wv_ref, vec_ref,
                out_ref):
    f32 = jnp.float32
    D = D_MODEL
    S = x_ref.shape[0]
    P = patch_ref.shape[0]

    vecs = vec_ref[...]                                   # (9, D) f32
    row = lambda i: vecs[i:i + 1, :]                      # (1, D)
    b_patch, b_ffn2, b_vocab = row(0), row(1), row(2)

    # --- encoder: patch embedding, stays in VMEM for the whole step ---------
    enc = jnp.dot(patch_ref[...], wp_ref[...],
                  preferred_element_type=f32) + b_patch   # (P, D) f32
    enc = jnp.maximum(enc, 0.0)
    enc_b = _bf16(enc)

    x = x_ref[...]                                        # (S, D) f32 residual stream
    xb = _bf16(x)

    # --- in-kernel masks (per-batch only: no cross-batch keys at all) -------
    rows = lax.broadcasted_iota(jnp.int32, (S, S), 0)
    cols = lax.broadcasted_iota(jnp.int32, (S, S), 1)
    keep_s = (cols <= rows) & (amask_ref[...] > 0.5)      # causal & key-padding
    sbias = jnp.where(keep_s, 0.0, NEG_INF)               # (S, S) f32
    cbias = jnp.where(cmask_ref[...] > 0.5, 0.0, NEG_INF)  # (1, P) f32

    # --- causal self-attention (fused QKV; slices are 128-lane aligned) -----
    qkv = jnp.dot(xb, wqkv_ref[...], preferred_element_type=f32)      # (S, 3D)
    q, k, v = qkv[:, :D], qkv[:, D:2 * D], qkv[:, 2 * D:]
    s = lax.dot_general(_bf16(q), _bf16(k), (((1,), (1,)), ((), ())),
                        preferred_element_type=f32) * SCALE + sbias
    attn = jnp.dot(_bf16(_softmax(s)), _bf16(v), preferred_element_type=f32)
    attn = jnp.dot(_bf16(attn), wo_ref[...], preferred_element_type=f32)
    h = _layer_norm(x + attn, row(3), row(4))

    # --- cross-attention to encoder outputs (fused KV, lane-aligned) --------
    q2 = jnp.dot(_bf16(h), wq2_ref[...], preferred_element_type=f32)
    kv2 = jnp.dot(enc_b, wkv2_ref[...], preferred_element_type=f32)   # (P, 2D)
    k2, v2 = kv2[:, :D], kv2[:, D:]
    s2 = lax.dot_general(_bf16(q2), _bf16(k2), (((1,), (1,)), ((), ())),
                         preferred_element_type=f32) * SCALE + cbias
    cattn = jnp.dot(_bf16(_softmax(s2)), _bf16(v2), preferred_element_type=f32)
    cattn = jnp.dot(_bf16(cattn), wo2_ref[...], preferred_element_type=f32)
    h2 = _layer_norm(h + cattn, row(5), row(6))

    # --- feed-forward --------------------------------------------------------
    f = jnp.dot(_bf16(h2), wf1_ref[...], preferred_element_type=f32) + bf1_ref[...]
    f = jnp.maximum(f, 0.0)
    f = jnp.dot(_bf16(f), wf2_ref[...], preferred_element_type=f32) + b_ffn2
    h3 = _layer_norm(h2 + f, row(7), row(8))

    # --- LM head (lane-dense 128-wide output -> unmasked stores) ------------
    out_ref[...] = jnp.dot(_bf16(h3), wv_ref[...],
                           preferred_element_type=f32) + b_vocab


# ---------------------------------------------------------------------------
# Glue (pure layout / parameter setup)
# ---------------------------------------------------------------------------
def images_to_patches(images):
    # images: NCHW (PyTorch layout) -> (B, P, C*ph*pw)
    B, C, H, W = images.shape
    ph = pw = PATCH
    x = images.reshape(B, C, H // ph, ph, W // pw, pw)
    x = x.transpose(0, 2, 4, 1, 3, 5)
    return x.reshape(B, (H // ph) * (W // pw), C * ph * pw)


def init_params(key):
    ks = jax.random.split(key, 12)
    s = 0.02
    bf16 = jnp.bfloat16

    def w(k, shape):
        return (jax.random.normal(k, shape, jnp.float32) * s).astype(bf16)

    one = jnp.ones((1, D_MODEL), jnp.float32)
    zero = jnp.zeros((1, D_MODEL), jnp.float32)
    # packed small vectors: b_patch, b_ffn2, b_vocab, ln0(g,b), ln1(g,b), ln2(g,b)
    vecs = jnp.concatenate([zero, zero, zero, one, zero, one, zero, one, zero], axis=0)

    return {
        "emb": jax.random.normal(ks[0], (VOCAB, D_MODEL), jnp.float32) * s,
        "pos": jax.random.normal(ks[1], (MAX_POS, D_MODEL), jnp.float32) * s,
        "w_patch": w(ks[2], (PD_PAD, D_MODEL)),
        "w_qkv": w(ks[3], (D_MODEL, 3 * D_MODEL)),
        "w_self_o": w(ks[4], (D_MODEL, D_MODEL)),
        "w_cross_q": w(ks[5], (D_MODEL, D_MODEL)),
        "w_cross_kv": w(ks[6], (D_MODEL, 2 * D_MODEL)),
        "w_cross_o": w(ks[7], (D_MODEL, D_MODEL)),
        "w_ffn1": w(ks[8], (D_MODEL, D_FF)),
        "b_ffn1": jnp.zeros((1, D_FF), jnp.float32),
        "w_ffn2": w(ks[9], (D_FF, D_MODEL)),
        "w_vocab": w(ks[10], (D_MODEL, VOCAB)),
        "vecs": vecs,
    }


def rrg_forward(params, input_ids, attention_mask, images, images_mask):
    B, S = input_ids.shape
    assert S <= MAX_POS, "positional table supports S <= 64"
    D = D_MODEL

    # self.enc.encode(images, images_mask): patchify in the wrapper, embed in-kernel.
    patches = images_to_patches(images.astype(jnp.float32))          # (B, P, 48)
    _, P, PD = patches.shape
    patches = jnp.pad(patches, ((0, 0), (0, 0), (0, PD_PAD - PD))).astype(jnp.bfloat16)

    # Token + positional embedding (XLA gather).
    x_emb = jnp.take(params["emb"], input_ids, axis=0) + params["pos"][None, :S, :]
    x_emb = x_emb.astype(jnp.float32)                                 # (B, S, D)

    # Tiny per-batch mask rows (masks themselves are built in-kernel via iota).
    amask = attention_mask.reshape(B, 1, S).astype(jnp.float32)      # key padding
    cmask = jnp.broadcast_to(images_mask.reshape(B, 1, 1),
                             (B, 1, P)).astype(jnp.float32)          # image mask

    wspec = lambda shape: pl.BlockSpec(shape, lambda b: (0,) * len(shape))
    logits = pl.pallas_call(
        _rrg_kernel,
        grid=(B,),
        out_shape=jax.ShapeDtypeStruct((B, S, VOCAB), jnp.float32),
        in_specs=[
            pl.BlockSpec((None, P, PD_PAD), lambda b: (b, 0, 0)),     # patches
            pl.BlockSpec((None, S, D), lambda b: (b, 0, 0)),          # x_emb
            pl.BlockSpec((None, 1, S), lambda b: (b, 0, 0)),          # attention_mask
            pl.BlockSpec((None, 1, P), lambda b: (b, 0, 0)),          # images_mask
            wspec((PD_PAD, D)),                                       # w_patch
            wspec((D, 3 * D)),                                        # w_qkv
            wspec((D, D)),                                            # w_self_o
            wspec((D, D)),                                            # w_cross_q
            wspec((D, 2 * D)),                                        # w_cross_kv
            wspec((D, D)),                                            # w_cross_o
            wspec((D, D_FF)),                                         # w_ffn1
            wspec((1, D_FF)),                                         # b_ffn1
            wspec((D_FF, D)),                                         # w_ffn2
            wspec((D, VOCAB)),                                        # w_vocab
            wspec((9, D)),                                            # packed vecs
        ],
        out_specs=pl.BlockSpec((None, S, VOCAB), lambda b: (b, 0, 0)),
        compiler_params=pltpu.CompilerParams(
            dimension_semantics=("parallel",),
            vmem_limit_bytes=32 * 1024 * 1024),
    )(patches, x_emb, amask, cmask,
      params["w_patch"], params["w_qkv"], params["w_self_o"],
      params["w_cross_q"], params["w_cross_kv"], params["w_cross_o"],
      params["w_ffn1"], params["b_ffn1"], params["w_ffn2"],
      params["w_vocab"], params["vecs"])

    return logits                                                     # (B, S, VOCAB)


if __name__ == "__main__":
    key = jax.random.PRNGKey(0)
    kp, ki, kimg = jax.random.split(key, 3)
    params = init_params(kp)

    B, S = 2, 8
    input_ids = jax.random.randint(ki, (B, S), 0, VOCAB, dtype=jnp.int32)
    attention_mask = jnp.ones((B, S), jnp.float32)
    images = jax.random.normal(kimg, (B, IMG_C, 16, 16), jnp.float32)  # NCHW
    images_mask = jnp.ones((B,), jnp.float32)

    forward = jax.jit(rrg_forward)
    logits = forward(params, input_ids, attention_mask, images, images_mask)
    jax.block_until_ready(logits)
    assert logits.shape == (B, S, VOCAB)
    assert bool(jnp.all(jnp.isfinite(logits)))
    print("KERNEL_OK")
</pallas_src>

<mosaic_0001>
module attributes {stable_mosaic.version = 11 : i64} {
  func.func @_rrg_kernel(%arg0: i32, %arg1: memref<1x16x128xbf16, #tpu.memory_space<vmem>>, %arg2: memref<1x8x128xf32, #tpu.memory_space<vmem>>, %arg3: memref<1x1x8xf32, #tpu.memory_space<vmem>>, %arg4: memref<1x1x16xf32, #tpu.memory_space<vmem>>, %arg5: memref<128x128xbf16, #tpu.memory_space<vmem>>, %arg6: memref<128x384xbf16, #tpu.memory_space<vmem>>, %arg7: memref<128x128xbf16, #tpu.memory_space<vmem>>, %arg8: memref<128x128xbf16, #tpu.memory_space<vmem>>, %arg9: memref<128x256xbf16, #tpu.memory_space<vmem>>, %arg10: memref<128x128xbf16, #tpu.memory_space<vmem>>, %arg11: memref<128x256xbf16, #tpu.memory_space<vmem>>, %arg12: memref<1x256xf32, #tpu.memory_space<vmem>>, %arg13: memref<256x128xbf16, #tpu.memory_space<vmem>>, %arg14: memref<128x128xbf16, #tpu.memory_space<vmem>>, %arg15: memref<9x128xf32, #tpu.memory_space<vmem>>, %arg16: memref<1x8x128xf32, #tpu.memory_space<vmem>>) attributes {dimension_semantics = [#tpu.dimension_semantics<parallel>], iteration_bounds = array<i64: 2>, scalar_prefetch = 0 : i64, scratch_operands = 0 : i64, tpu.core_type = #tpu.core_type<tc>, window_params = [{transform_indices = @transform_0, window_bounds = array<i64: 1, 16, 128>}, {transform_indices = @transform_1, window_bounds = array<i64: 1, 8, 128>}, {transform_indices = @transform_2, window_bounds = array<i64: 1, 1, 8>}, {transform_indices = @transform_3, window_bounds = array<i64: 1, 1, 16>}, {pipeline_mode = #tpu.pipeline_mode<synchronous>, transform_indices = @transform_4, window_bounds = array<i64: 128, 128>}, {pipeline_mode = #tpu.pipeline_mode<synchronous>, transform_indices = @transform_5, window_bounds = array<i64: 128, 384>}, {pipeline_mode = #tpu.pipeline_mode<synchronous>, transform_indices = @transform_6, window_bounds = array<i64: 128, 128>}, {pipeline_mode = #tpu.pipeline_mode<synchronous>, transform_indices = @transform_7, window_bounds = array<i64: 128, 128>}, {pipeline_mode = #tpu.pipeline_mode<synchronous>, transform_indices = @transform_8, window_bounds = array<i64: 128, 256>}, {pipeline_mode = #tpu.pipeline_mode<synchronous>, transform_indices = @transform_9, window_bounds = array<i64: 128, 128>}, {pipeline_mode = #tpu.pipeline_mode<synchronous>, transform_indices = @transform_10, window_bounds = array<i64: 128, 256>}, {pipeline_mode = #tpu.pipeline_mode<synchronous>, transform_indices = @transform_11, window_bounds = array<i64: 1, 256>}, {pipeline_mode = #tpu.pipeline_mode<synchronous>, transform_indices = @transform_12, window_bounds = array<i64: 256, 128>}, {pipeline_mode = #tpu.pipeline_mode<synchronous>, transform_indices = @transform_13, window_bounds = array<i64: 128, 128>}, {pipeline_mode = #tpu.pipeline_mode<synchronous>, transform_indices = @transform_14, window_bounds = array<i64: 9, 128>}, {transform_indices = @transform_15, window_bounds = array<i64: 1, 8, 128>}]} {
    %c0 = arith.constant 0 : index
    %c0_0 = arith.constant 0 : index
    %0 = vector.load %arg15[%c0, %c0_0] : memref<9x128xf32, #tpu.memory_space<vmem>>, vector<9x128xf32>
    %1 = vector.extract_strided_slice %0 {offsets = [0, 0], sizes = [1, 128], strides = [1, 1]} : vector<9x128xf32> to vector<1x128xf32>
    %2 = vector.extract_strided_slice %0 {offsets = [1, 0], sizes = [1, 128], strides = [1, 1]} : vector<9x128xf32> to vector<1x128xf32>
    %3 = vector.extract_strided_slice %0 {offsets = [2, 0], sizes = [1, 128], strides = [1, 1]} : vector<9x128xf32> to vector<1x128xf32>
    %c0_1 = arith.constant 0 : index
    %c0_2 = arith.constant 0 : index
    %c0_3 = arith.constant 0 : index
    %4 = vector.load %arg1[%c0_1, %c0_2, %c0_3] : memref<1x16x128xbf16, #tpu.memory_space<vmem>>, vector<1x16x128xbf16>
    %5 = vector.shape_cast %4 : vector<1x16x128xbf16> to vector<16x128xbf16>
    %c0_4 = arith.constant 0 : index
    %c0_5 = arith.constant 0 : index
    %6 = vector.load %arg5[%c0_4, %c0_5] : memref<128x128xbf16, #tpu.memory_space<vmem>>, vector<128x128xbf16>
    %cst = arith.constant dense<0.000000e+00> : vector<16x128xf32>
    %7 = tpu.matmul %5, %6, %cst {dimension_numbers = #tpu.dot_dimension_numbers<[1], [0], [0], [1], [0, 0, 1, 1], [], []>} : vector<16x128xbf16>, vector<128x128xbf16>, vector<16x128xf32> -> vector<16x128xf32>
    %8 = vector.broadcast %1 : vector<1x128xf32> to vector<16x128xf32>
    %9 = arith.addf %7, %8 : vector<16x128xf32>
    %cst_6 = arith.constant 0.000000e+00 : f32
    %10 = vector.broadcast %cst_6 : f32 to vector<16x128xf32>
    %11 = arith.maximumf %9, %10 : vector<16x128xf32>
    %12 = arith.truncf %11 : vector<16x128xf32> to vector<16x128xbf16>
    %c0_7 = arith.constant 0 : index
    %c0_8 = arith.constant 0 : index
    %c0_9 = arith.constant 0 : index
    %13 = vector.load %arg2[%c0_7, %c0_8, %c0_9] : memref<1x8x128xf32, #tpu.memory_space<vmem>>, vector<1x8x128xf32>
    %14 = vector.shape_cast %13 : vector<1x8x128xf32> to vector<8x128xf32>
    %15 = arith.truncf %14 : vector<8x128xf32> to vector<8x128xbf16>
    %16 = tpu.iota {dimensions = array<i32: 0>} : vector<8x8xi32>
    %17 = tpu.iota {dimensions = array<i32: 1>} : vector<8x8xi32>
    %18 = arith.cmpi sle, %17, %16 : vector<8x8xi32>
    %c0_10 = arith.constant 0 : index
    %c0_11 = arith.constant 0 : index
    %c0_12 = arith.constant 0 : index
    %19 = vector.load %arg3[%c0_10, %c0_11, %c0_12] : memref<1x1x8xf32, #tpu.memory_space<vmem>>, vector<1x1x8xf32>
    %20 = vector.shape_cast %19 : vector<1x1x8xf32> to vector<1x8xf32>
    %cst_13 = arith.constant 5.000000e-01 : f32
    %21 = vector.broadcast %cst_13 : f32 to vector<1x8xf32>
    %22 = arith.cmpf ogt, %20, %21 : vector<1x8xf32>
    %23 = vector.broadcast %22 : vector<1x8xi1> to vector<8x8xi1>
    %24 = arith.andi %18, %23 : vector<8x8xi1>
    %cst_14 = arith.constant 0.000000e+00 : f32
    %cst_15 = arith.constant -1.000000e+09 : f32
    %25 = vector.broadcast %cst_14 : f32 to vector<8x8xf32>
    %26 = vector.broadcast %cst_15 : f32 to vector<8x8xf32>
    %27 = arith.select %24, %25, %26 : vector<8x8xi1>, vector<8x8xf32>
    %c0_16 = arith.constant 0 : index
    %c0_17 = arith.constant 0 : index
    %c0_18 = arith.constant 0 : index
    %28 = vector.load %arg4[%c0_16, %c0_17, %c0_18] : memref<1x1x16xf32, #tpu.memory_space<vmem>>, vector<1x1x16xf32>
    %29 = vector.shape_cast %28 : vector<1x1x16xf32> to vector<1x16xf32>
    %cst_19 = arith.constant 5.000000e-01 : f32
    %30 = vector.broadcast %cst_19 : f32 to vector<1x16xf32>
    %31 = arith.cmpf ogt, %29, %30 : vector<1x16xf32>
    %cst_20 = arith.constant 0.000000e+00 : f32
    %cst_21 = arith.constant -1.000000e+09 : f32
    %32 = vector.broadcast %cst_20 : f32 to vector<1x16xf32>
    %33 = vector.broadcast %cst_21 : f32 to vector<1x16xf32>
    %34 = arith.select %31, %32, %33 : vector<1x16xi1>, vector<1x16xf32>
    %c0_22 = arith.constant 0 : index
    %c0_23 = arith.constant 0 : index
    %35 = vector.load %arg6[%c0_22, %c0_23] : memref<128x384xbf16, #tpu.memory_space<vmem>>, vector<128x384xbf16>
    %cst_24 = arith.constant dense<0.000000e+00> : vector<8x384xf32>
    %36 = tpu.matmul %15, %35, %cst_24 {dimension_numbers = #tpu.dot_dimension_numbers<[1], [0], [0], [1], [0, 0, 1, 1], [], []>} : vector<8x128xbf16>, vector<128x384xbf16>, vector<8x384xf32> -> vector<8x384xf32>
    %37 = vector.extract_strided_slice %36 {offsets = [0, 0], sizes = [8, 128], strides = [1, 1]} : vector<8x384xf32> to vector<8x128xf32>
    %38 = vector.extract_strided_slice %36 {offsets = [0, 128], sizes = [8, 128], strides = [1, 1]} : vector<8x384xf32> to vector<8x128xf32>
    %39 = vector.extract_strided_slice %36 {offsets = [0, 256], sizes = [8, 128], strides = [1, 1]} : vector<8x384xf32> to vector<8x128xf32>
    %40 = arith.truncf %37 : vector<8x128xf32> to vector<8x128xbf16>
    %41 = arith.truncf %38 : vector<8x128xf32> to vector<8x128xbf16>
    %cst_25 = arith.constant dense<0.000000e+00> : vector<8x8xf32>
    %42 = tpu.matmul %40, %41, %cst_25 {dimension_numbers = #tpu.dot_dimension_numbers<[1], [1], [0], [0], [0, 0, 1, 0], [], []>} : vector<8x128xbf16>, vector<8x128xbf16>, vector<8x8xf32> -> vector<8x8xf32>
    %cst_26 = arith.constant 0.0883883461 : f32
    %43 = vector.broadcast %cst_26 : f32 to vector<8x8xf32>
    %44 = arith.mulf %42, %43 : vector<8x8xf32>
    %45 = arith.addf %44, %27 : vector<8x8xf32>
    %cst_27 = arith.constant dense<0xFF800000> : vector<8xf32>
    %46 = vector.multi_reduction <maximumf>, %45, %cst_27 [1] : vector<8x8xf32> to vector<8xf32>
    %47 = vector.shape_cast %46 : vector<8xf32> to vector<8x1xf32>
    %48 = vector.broadcast %47 : vector<8x1xf32> to vector<8x8xf32>
    %49 = arith.subf %45, %48 : vector<8x8xf32>
    %50 = math.exp %49 : vector<8x8xf32>
    %cst_28 = arith.constant dense<0.000000e+00> : vector<8xf32>
    %51 = vector.multi_reduction <add>, %50, %cst_28 [1] : vector<8x8xf32> to vector<8xf32>
    %52 = vector.shape_cast %51 : vector<8xf32> to vector<8x1xf32>
    %53 = tpu.reciprocal %52 {approx = true} : vector<8x1xf32> -> vector<8x1xf32>
    %54 = vector.broadcast %53 : vector<8x1xf32> to vector<8x8xf32>
    %55 = arith.mulf %50, %54 : vector<8x8xf32>
    %56 = arith.truncf %55 : vector<8x8xf32> to vector<8x8xbf16>
    %57 = arith.truncf %39 : vector<8x128xf32> to vector<8x128xbf16>
    %cst_29 = arith.constant dense<0.000000e+00> : vector<8x128xf32>
    %58 = tpu.matmul %56, %57, %cst_29 {dimension_numbers = #tpu.dot_dimension_numbers<[1], [0], [0], [1], [0, 0, 1, 1], [], []>} : vector<8x8xbf16>, vector<8x128xbf16>, vector<8x128xf32> -> vector<8x128xf32>
    %59 = arith.truncf %58 : vector<8x128xf32> to vector<8x128xbf16>
    %c0_30 = arith.constant 0 : index
    %c0_31 = arith.constant 0 : index
    %60 = vector.load %arg7[%c0_30, %c0_31] : memref<128x128xbf16, #tpu.memory_space<vmem>>, vector<128x128xbf16>
    %cst_32 = arith.constant dense<0.000000e+00> : vector<8x128xf32>
    %61 = tpu.matmul %59, %60, %cst_32 {dimension_numbers = #tpu.dot_dimension_numbers<[1], [0], [0], [1], [0, 0, 1, 1], [], []>} : vector<8x128xbf16>, vector<128x128xbf16>, vector<8x128xf32> -> vector<8x128xf32>
    %62 = arith.addf %14, %61 : vector<8x128xf32>
    %63 = vector.extract_strided_slice %0 {offsets = [3, 0], sizes = [1, 128], strides = [1, 1]} : vector<9x128xf32> to vector<1x128xf32>
    %64 = vector.extract_strided_slice %0 {offsets = [4, 0], sizes = [1, 128], strides = [1, 1]} : vector<9x128xf32> to vector<1x128xf32>
    %cst_33 = arith.constant dense<0.000000e+00> : vector<8xf32>
    %65 = vector.multi_reduction <add>, %62, %cst_33 [1] : vector<8x128xf32> to vector<8xf32>
    %66 = vector.shape_cast %65 : vector<8xf32> to vector<8x1xf32>
    %cst_34 = arith.constant 1.280000e+02 : f32
    %67 = vector.broadcast %cst_34 : f32 to vector<8x1xf32>
    %68 = arith.divf %66, %67 : vector<8x1xf32>
    %69 = vector.broadcast %68 : vector<8x1xf32> to vector<8x128xf32>
    %70 = arith.subf %62, %69 : vector<8x128xf32>
    %71 = arith.mulf %70, %70 : vector<8x128xf32>
    %cst_35 = arith.constant dense<0.000000e+00> : vector<8xf32>
    %72 = vector.multi_reduction <add>, %71, %cst_35 [1] : vector<8x128xf32> to vector<8xf32>
    %73 = vector.shape_cast %72 : vector<8xf32> to vector<8x1xf32>
    %cst_36 = arith.constant 1.280000e+02 : f32
    %74 = vector.broadcast %cst_36 : f32 to vector<8x1xf32>
    %75 = arith.divf %73, %74 : vector<8x1xf32>
    %76 = vector.broadcast %68 : vector<8x1xf32> to vector<8x128xf32>
    %77 = arith.subf %62, %76 : vector<8x128xf32>
    %cst_37 = arith.constant 9.99999974E-6 : f32
    %78 = vector.broadcast %cst_37 : f32 to vector<8x1xf32>
    %79 = arith.addf %75, %78 : vector<8x1xf32>
    %80 = math.rsqrt %79 : vector<8x1xf32>
    %81 = vector.broadcast %80 : vector<8x1xf32> to vector<8x128xf32>
    %82 = arith.mulf %77, %81 : vector<8x128xf32>
    %83 = vector.broadcast %63 : vector<1x128xf32> to vector<8x128xf32>
    %84 = arith.mulf %82, %83 : vector<8x128xf32>
    %85 = vector.broadcast %64 : vector<1x128xf32> to vector<8x128xf32>
    %86 = arith.addf %84, %85 : vector<8x128xf32>
    %87 = arith.truncf %86 : vector<8x128xf32> to vector<8x128xbf16>
    %c0_38 = arith.constant 0 : index
    %c0_39 = arith.constant 0 : index
    %88 = vector.load %arg8[%c0_38, %c0_39] : memref<128x128xbf16, #tpu.memory_space<vmem>>, vector<128x128xbf16>
    %cst_40 = arith.constant dense<0.000000e+00> : vector<8x128xf32>
    %89 = tpu.matmul %87, %88, %cst_40 {dimension_numbers = #tpu.dot_dimension_numbers<[1], [0], [0], [1], [0, 0, 1, 1], [], []>} : vector<8x128xbf16>, vector<128x128xbf16>, vector<8x128xf32> -> vector<8x128xf32>
    %c0_41 = arith.constant 0 : index
    %c0_42 = arith.constant 0 : index
    %90 = vector.load %arg9[%c0_41, %c0_42] : memref<128x256xbf16, #tpu.memory_space<vmem>>, vector<128x256xbf16>
    %cst_43 = arith.constant dense<0.000000e+00> : vector<16x256xf32>
    %91 = tpu.matmul %12, %90, %cst_43 {dimension_numbers = #tpu.dot_dimension_numbers<[1], [0], [0], [1], [0, 0, 1, 1], [], []>} : vector<16x128xbf16>, vector<128x256xbf16>, vector<16x256xf32> -> vector<16x256xf32>
    %92 = vector.extract_strided_slice %91 {offsets = [0, 0], sizes = [16, 128], strides = [1, 1]} : vector<16x256xf32> to vector<16x128xf32>
    %93 = vector.extract_strided_slice %91 {offsets = [0, 128], sizes = [16, 128], strides = [1, 1]} : vector<16x256xf32> to vector<16x128xf32>
    %94 = arith.truncf %89 : vector<8x128xf32> to vector<8x128xbf16>
    %95 = arith.truncf %92 : vector<16x128xf32> to vector<16x128xbf16>
    %cst_44 = arith.constant dense<0.000000e+00> : vector<8x16xf32>
    %96 = tpu.matmul %94, %95, %cst_44 {dimension_numbers = #tpu.dot_dimension_numbers<[1], [1], [0], [0], [0, 0, 1, 0], [], []>} : vector<8x128xbf16>, vector<16x128xbf16>, vector<8x16xf32> -> vector<8x16xf32>
    %cst_45 = arith.constant 0.0883883461 : f32
    %97 = vector.broadcast %cst_45 : f32 to vector<8x16xf32>
    %98 = arith.mulf %96, %97 : vector<8x16xf32>
    %99 = vector.broadcast %34 : vector<1x16xf32> to vector<8x16xf32>
    %100 = arith.addf %98, %99 : vector<8x16xf32>
    %cst_46 = arith.constant dense<0xFF800000> : vector<8xf32>
    %101 = vector.multi_reduction <maximumf>, %100, %cst_46 [1] : vector<8x16xf32> to vector<8xf32>
    %102 = vector.shape_cast %101 : vector<8xf32> to vector<8x1xf32>
    %103 = vector.broadcast %102 : vector<8x1xf32> to vector<8x16xf32>
    %104 = arith.subf %100, %103 : vector<8x16xf32>
    %105 = math.exp %104 : vector<8x16xf32>
    %cst_47 = arith.constant dense<0.000000e+00> : vector<8xf32>
    %106 = vector.multi_reduction <add>, %105, %cst_47 [1] : vector<8x16xf32> to vector<8xf32>
    %107 = vector.shape_cast %106 : vector<8xf32> to vector<8x1xf32>
    %108 = tpu.reciprocal %107 {approx = true} : vector<8x1xf32> -> vector<8x1xf32>
    %109 = vector.broadcast %108 : vector<8x1xf32> to vector<8x16xf32>
    %110 = arith.mulf %105, %109 : vector<8x16xf32>
    %111 = arith.truncf %110 : vector<8x16xf32> to vector<8x16xbf16>
    %112 = arith.truncf %93 : vector<16x128xf32> to vector<16x128xbf16>
    %cst_48 = arith.constant dense<0.000000e+00> : vector<8x128xf32>
    %113 = tpu.matmul %111, %112, %cst_48 {dimension_numbers = #tpu.dot_dimension_numbers<[1], [0], [0], [1], [0, 0, 1, 1], [], []>} : vector<8x16xbf16>, vector<16x128xbf16>, vector<8x128xf32> -> vector<8x128xf32>
    %114 = arith.truncf %113 : vector<8x128xf32> to vector<8x128xbf16>
    %c0_49 = arith.constant 0 : index
    %c0_50 = arith.constant 0 : index
    %115 = vector.load %arg10[%c0_49, %c0_50] : memref<128x128xbf16, #tpu.memory_space<vmem>>, vector<128x128xbf16>
    %cst_51 = arith.constant dense<0.000000e+00> : vector<8x128xf32>
    %116 = tpu.matmul %114, %115, %cst_51 {dimension_numbers = #tpu.dot_dimension_numbers<[1], [0], [0], [1], [0, 0, 1, 1], [], []>} : vector<8x128xbf16>, vector<128x128xbf16>, vector<8x128xf32> -> vector<8x128xf32>
    %117 = arith.addf %86, %116 : vector<8x128xf32>
    %118 = vector.extract_strided_slice %0 {offsets = [5, 0], sizes = [1, 128], strides = [1, 1]} : vector<9x128xf32> to vector<1x128xf32>
    %119 = vector.extract_strided_slice %0 {offsets = [6, 0], sizes = [1, 128], strides = [1, 1]} : vector<9x128xf32> to vector<1x128xf32>
    %cst_52 = arith.constant dense<0.000000e+00> : vector<8xf32>
    %120 = vector.multi_reduction <add>, %117, %cst_52 [1] : vector<8x128xf32> to vector<8xf32>
    %121 = vector.shape_cast %120 : vector<8xf32> to vector<8x1xf32>
    %cst_53 = arith.constant 1.280000e+02 : f32
    %122 = vector.broadcast %cst_53 : f32 to vector<8x1xf32>
    %123 = arith.divf %121, %122 : vector<8x1xf32>
    %124 = vector.broadcast %123 : vector<8x1xf32> to vector<8x128xf32>
    %125 = arith.subf %117, %124 : vector<8x128xf32>
    %126 = arith.mulf %125, %125 : vector<8x128xf32>
    %cst_54 = arith.constant dense<0.000000e+00> : vector<8xf32>
    %127 = vector.multi_reduction <add>, %126, %cst_54 [1] : vector<8x128xf32> to vector<8xf32>
    %128 = vector.shape_cast %127 : vector<8xf32> to vector<8x1xf32>
    %cst_55 = arith.constant 1.280000e+02 : f32
    %129 = vector.broadcast %cst_55 : f32 to vector<8x1xf32>
    %130 = arith.divf %128, %129 : vector<8x1xf32>
    %131 = vector.broadcast %123 : vector<8x1xf32> to vector<8x128xf32>
    %132 = arith.subf %117, %131 : vector<8x128xf32>
    %cst_56 = arith.constant 9.99999974E-6 : f32
    %133 = vector.broadcast %cst_56 : f32 to vector<8x1xf32>
    %134 = arith.addf %130, %133 : vector<8x1xf32>
    %135 = math.rsqrt %134 : vector<8x1xf32>
    %136 = vector.broadcast %135 : vector<8x1xf32> to vector<8x128xf32>
    %137 = arith.mulf %132, %136 : vector<8x128xf32>
    %138 = vector.broadcast %118 : vector<1x128xf32> to vector<8x128xf32>
    %139 = arith.mulf %137, %138 : vector<8x128xf32>
    %140 = vector.broadcast %119 : vector<1x128xf32> to vector<8x128xf32>
    %141 = arith.addf %139, %140 : vector<8x128xf32>
    %142 = arith.truncf %141 : vector<8x128xf32> to vector<8x128xbf16>
    %c0_57 = arith.constant 0 : index
    %c0_58 = arith.constant 0 : index
    %143 = vector.load %arg11[%c0_57, %c0_58] : memref<128x256xbf16, #tpu.memory_space<vmem>>, vector<128x256xbf16>
    %cst_59 = arith.constant dense<0.000000e+00> : vector<8x256xf32>
    %144 = tpu.matmul %142, %143, %cst_59 {dimension_numbers = #tpu.dot_dimension_numbers<[1], [0], [0], [1], [0, 0, 1, 1], [], []>} : vector<8x128xbf16>, vector<128x256xbf16>, vector<8x256xf32> -> vector<8x256xf32>
    %c0_60 = arith.constant 0 : index
    %c0_61 = arith.constant 0 : index
    %145 = vector.load %arg12[%c0_60, %c0_61] : memref<1x256xf32, #tpu.memory_space<vmem>>, vector<1x256xf32>
    %146 = vector.broadcast %145 : vector<1x256xf32> to vector<8x256xf32>
    %147 = arith.addf %144, %146 : vector<8x256xf32>
    %cst_62 = arith.constant 0.000000e+00 : f32
    %148 = vector.broadcast %cst_62 : f32 to vector<8x256xf32>
    %149 = arith.maximumf %147, %148 : vector<8x256xf32>
    %150 = arith.truncf %149 : vector<8x256xf32> to vector<8x256xbf16>
    %c0_63 = arith.constant 0 : index
    %c0_64 = arith.constant 0 : index
    %151 = vector.load %arg13[%c0_63, %c0_64] : memref<256x128xbf16, #tpu.memory_space<vmem>>, vector<256x128xbf16>
    %cst_65 = arith.constant dense<0.000000e+00> : vector<8x128xf32>
    %152 = tpu.matmul %150, %151, %cst_65 {dimension_numbers = #tpu.dot_dimension_numbers<[1], [0], [0], [1], [0, 0, 1, 1], [], []>} : vector<8x256xbf16>, vector<256x128xbf16>, vector<8x128xf32> -> vector<8x128xf32>
    %153 = vector.broadcast %2 : vector<1x128xf32> to vector<8x128xf32>
    %154 = arith.addf %152, %153 : vector<8x128xf32>
    %155 = arith.addf %141, %154 : vector<8x128xf32>
    %156 = vector.extract_strided_slice %0 {offsets = [7, 0], sizes = [1, 128], strides = [1, 1]} : vector<9x128xf32> to vector<1x128xf32>
    %157 = vector.extract_strided_slice %0 {offsets = [8, 0], sizes = [1, 128], strides = [1, 1]} : vector<9x128xf32> to vector<1x128xf32>
    %cst_66 = arith.constant dense<0.000000e+00> : vector<8xf32>
    %158 = vector.multi_reduction <add>, %155, %cst_66 [1] : vector<8x128xf32> to vector<8xf32>
    %159 = vector.shape_cast %158 : vector<8xf32> to vector<8x1xf32>
    %cst_67 = arith.constant 1.280000e+02 : f32
    %160 = vector.broadcast %cst_67 : f32 to vector<8x1xf32>
    %161 = arith.divf %159, %160 : vector<8x1xf32>
    %162 = vector.broadcast %161 : vector<8x1xf32> to vector<8x128xf32>
    %163 = arith.subf %155, %162 : vector<8x128xf32>
    %164 = arith.mulf %163, %163 : vector<8x128xf32>
    %cst_68 = arith.constant dense<0.000000e+00> : vector<8xf32>
    %165 = vector.multi_reduction <add>, %164, %cst_68 [1] : vector<8x128xf32> to vector<8xf32>
    %166 = vector.shape_cast %165 : vector<8xf32> to vector<8x1xf32>
    %cst_69 = arith.constant 1.280000e+02 : f32
    %167 = vector.broadcast %cst_69 : f32 to vector<8x1xf32>
    %168 = arith.divf %166, %167 : vector<8x1xf32>
    %169 = vector.broadcast %161 : vector<8x1xf32> to vector<8x128xf32>
    %170 = arith.subf %155, %169 : vector<8x128xf32>
    %cst_70 = arith.constant 9.99999974E-6 : f32
    %171 = vector.broadcast %cst_70 : f32 to vector<8x1xf32>
    %172 = arith.addf %168, %171 : vector<8x1xf32>
    %173 = math.rsqrt %172 : vector<8x1xf32>
    %174 = vector.broadcast %173 : vector<8x1xf32> to vector<8x128xf32>
    %175 = arith.mulf %170, %174 : vector<8x128xf32>
    %176 = vector.broadcast %156 : vector<1x128xf32> to vector<8x128xf32>
    %177 = arith.mulf %175, %176 : vector<8x128xf32>
    %178 = vector.broadcast %157 : vector<1x128xf32> to vector<8x128xf32>
    %179 = arith.addf %177, %178 : vector<8x128xf32>
    %180 = arith.truncf %179 : vector<8x128xf32> to vector<8x128xbf16>
    %c0_71 = arith.constant 0 : index
    %c0_72 = arith.constant 0 : index
    %181 = vector.load %arg14[%c0_71, %c0_72] : memref<128x128xbf16, #tpu.memory_space<vmem>>, vector<128x128xbf16>
    %cst_73 = arith.constant dense<0.000000e+00> : vector<8x128xf32>
    %182 = tpu.matmul %180, %181, %cst_73 {dimension_numbers = #tpu.dot_dimension_numbers<[1], [0], [0], [1], [0, 0, 1, 1], [], []>} : vector<8x128xbf16>, vector<128x128xbf16>, vector<8x128xf32> -> vector<8x128xf32>
    %183 = vector.broadcast %3 : vector<1x128xf32> to vector<8x128xf32>
    %184 = arith.addf %182, %183 : vector<8x128xf32>
    %c0_74 = arith.constant 0 : index
    %c0_75 = arith.constant 0 : index
    %c0_76 = arith.constant 0 : index
    %185 = vector.load %arg16[%c0_74, %c0_75, %c0_76] : memref<1x8x128xf32, #tpu.memory_space<vmem>>, vector<1x8x128xf32>
    %186 = vector.shape_cast %185 : vector<1x8x128xf32> to vector<8x128xf32>
    %187 = vector.shape_cast %184 : vector<8x128xf32> to vector<1x8x128xf32>
    tpu.vector_store %arg16[%c0_74, %c0_75, %c0_76], %187 {strides = array<i32>} : memref<1x8x128xf32, #tpu.memory_space<vmem>>, vector<1x8x128xf32>,
    return
  }
  func.func @transform_0(%arg0: i32) -> (i32, i32, i32) {
    %c0_i32 = arith.constant 0 : i32
    %c0_i32_0 = arith.constant 0 : i32
    %c0_i32_1 = arith.constant 0 : i32
    return %arg0, %c0_i32, %c0_i32_0 : i32, i32, i32
  }
  func.func @transform_1(%arg0: i32) -> (i32, i32, i32) {
    %c0_i32 = arith.constant 0 : i32
    %c0_i32_0 = arith.constant 0 : i32
    %c0_i32_1 = arith.constant 0 : i32
    return %arg0, %c0_i32, %c0_i32_0 : i32, i32, i32
  }
  func.func @transform_2(%arg0: i32) -> (i32, i32, i32) {
    %c0_i32 = arith.constant 0 : i32
    %c0_i32_0 = arith.constant 0 : i32
    %c0_i32_1 = arith.constant 0 : i32
    return %arg0, %c0_i32, %c0_i32_0 : i32, i32, i32
  }
  func.func @transform_3(%arg0: i32) -> (i32, i32, i32) {
    %c0_i32 = arith.constant 0 : i32
    %c0_i32_0 = arith.constant 0 : i32
    %c0_i32_1 = arith.constant 0 : i32
    return %arg0, %c0_i32, %c0_i32_0 : i32, i32, i32
  }
  func.func @transform_4(%arg0: i32) -> (i32, i32) {
    %c0_i32 = arith.constant 0 : i32
    %c0_i32_0 = arith.constant 0 : i32
    %c0_i32_1 = arith.constant 0 : i32
    return %c0_i32, %c0_i32_0 : i32, i32
  }
  func.func @transform_5(%arg0: i32) -> (i32, i32) {
    %c0_i32 = arith.constant 0 : i32
    %c0_i32_0 = arith.constant 0 : i32
    %c0_i32_1 = arith.constant 0 : i32
    return %c0_i32, %c0_i32_0 : i32, i32
  }
  func.func @transform_6(%arg0: i32) -> (i32, i32) {
    %c0_i32 = arith.constant 0 : i32
    %c0_i32_0 = arith.constant 0 : i32
    %c0_i32_1 = arith.constant 0 : i32
    return %c0_i32, %c0_i32_0 : i32, i32
  }
  func.func @transform_7(%arg0: i32) -> (i32, i32) {
    %c0_i32 = arith.constant 0 : i32
    %c0_i32_0 = arith.constant 0 : i32
    %c0_i32_1 = arith.constant 0 : i32
    return %c0_i32, %c0_i32_0 : i32, i32
  }
  func.func @transform_8(%arg0: i32) -> (i32, i32) {
    %c0_i32 = arith.constant 0 : i32
    %c0_i32_0 = arith.constant 0 : i32
    %c0_i32_1 = arith.constant 0 : i32
    return %c0_i32, %c0_i32_0 : i32, i32
  }
  func.func @transform_9(%arg0: i32) -> (i32, i32) {
    %c0_i32 = arith.constant 0 : i32
    %c0_i32_0 = arith.constant 0 : i32
    %c0_i32_1 = arith.constant 0 : i32
    return %c0_i32, %c0_i32_0 : i32, i32
  }
  func.func @transform_10(%arg0: i32) -> (i32, i32) {
    %c0_i32 = arith.constant 0 : i32
    %c0_i32_0 = arith.constant 0 : i32
    %c0_i32_1 = arith.constant 0 : i32
    return %c0_i32, %c0_i32_0 : i32, i32
  }
  func.func @transform_11(%arg0: i32) -> (i32, i32) {
    %c0_i32 = arith.constant 0 : i32
    %c0_i32_0 = arith.constant 0 : i32
    %c0_i32_1 = arith.constant 0 : i32
    return %c0_i32, %c0_i32_0 : i32, i32
  }
  func.func @transform_12(%arg0: i32) -> (i32, i32) {
    %c0_i32 = arith.constant 0 : i32
    %c0_i32_0 = arith.constant 0 : i32
    %c0_i32_1 = arith.constant 0 : i32
    return %c0_i32, %c0_i32_0 : i32, i32
  }
  func.func @transform_13(%arg0: i32) -> (i32, i32) {
    %c0_i32 = arith.constant 0 : i32
    %c0_i32_0 = arith.constant 0 : i32
    %c0_i32_1 = arith.constant 0 : i32
    return %c0_i32, %c0_i32_0 : i32, i32
  }
  func.func @transform_14(%arg0: i32) -> (i32, i32) {
    %c0_i32 = arith.constant 0 : i32
    %c0_i32_0 = arith.constant 0 : i32
    %c0_i32_1 = arith.constant 0 : i32
    return %c0_i32, %c0_i32_0 : i32, i32
  }
  func.func @transform_15(%arg0: i32) -> (i32, i32, i32) {
    %c0_i32 = arith.constant 0 : i32
    %c0_i32_0 = arith.constant 0 : i32
    %c0_i32_1 = arith.constant 0 : i32
    return %arg0, %c0_i32, %c0_i32_0 : i32, i32, i32
  }
}

</mosaic_0001>

<llo_original>
// kernel: rrg_forward.1
$region0: #{rrg_forward.1}
  #allocation0 [shape = 'u32[]', space=smem, size = 0x4, offset = 0x4, fixed_abs, tag = 'smem constant byte address 0x4 - core index']
  #allocation1 [shape = 'u32[144,128]{1,0:T(1,128)}', space=vmem, size = 0x12000, scoped, tag = 'internal scratch']
  %s0 = inlined_call_operand.vmem [shape: bf16[2,16,128], index: 0, kind: input, shape index: {}]
  %s1 = inlined_call_operand.vmem [shape: f32[2,8,128], index: 1, kind: input, shape index: {}]
  %s2 = inlined_call_operand.vmem [shape: f32[2,1,8], index: 2, kind: input, shape index: {}]
  %s3 = inlined_call_operand.vmem [shape: f32[2,1,16], index: 3, kind: input, shape index: {}]
  %s4 = inlined_call_operand.vmem [shape: bf16[128,128], index: 4, kind: input, shape index: {}]
  %s5 = inlined_call_operand.vmem [shape: bf16[128,384], index: 5, kind: input, shape index: {}]
  %s6 = inlined_call_operand.vmem [shape: bf16[128,128], index: 6, kind: input, shape index: {}]
  %s7 = inlined_call_operand.vmem [shape: bf16[128,128], index: 7, kind: input, shape index: {}]
  %s8 = inlined_call_operand.vmem [shape: bf16[128,256], index: 8, kind: input, shape index: {}]
  %s9 = inlined_call_operand.vmem [shape: bf16[128,128], index: 9, kind: input, shape index: {}]
  %s10 = inlined_call_operand.vmem [shape: bf16[128,256], index: 10, kind: input, shape index: {}]
  %s11 = inlined_call_operand.vmem [shape: f32[1,256], index: 11, kind: input, shape index: {}]
  %s12 = inlined_call_operand.vmem [shape: bf16[256,128], index: 12, kind: input, shape index: {}]
  %s13 = inlined_call_operand.vmem [shape: bf16[128,128], index: 13, kind: input, shape index: {}]
  %s14 = inlined_call_operand.vmem [shape: f32[9,128], index: 14, kind: input, shape index: {}]
  %s15 = inlined_call_operand.hbm [shape: f32[2,8,128], index: 15, kind: output, shape index: {}]
  %s16 = sld [smem:[#allocation0]]
  $region93: #{rrg_forward.1} parent=0
    _
  %s18 = ssub.s32 1, %s16
  %s19 = scalar_select 0, %s18, %s16
  $region1: #{rrg_forward.1} parent=0
    #allocation2 [shape = 'u8[8192]{0}', space=vmem, size = 0x2000, scoped, tag = 'output window, operand 0']
    #allocation3 [shape = 's32[2]{0}', space=sflag, size = 0x8, scoped, tag = 'scoped memory for rrg_forward.1']
    %20 = vsyncpa [#allocation3], 0
    %s21 = scalar_lea.sflag [#allocation3], 1
    %22 = vsyncpa %s21, 0
    loop: start=0, step=1, limit=4
    $region2: #{rrg_forward.1} parent=1 // loop_pre_header
      _
    $region3: #{rrg_forward.1} parent=1 // loop_header
      %s24 = sphi 0, %s28
      %p25 = scmp.ge.s32.totalorder %s24, 4
      %s34 = sphi 0, %s36
      %s37 = sphi 0, %s34
      %s38 = sphi 0, %s37
      %s54 = sphi 0, %s38
      %s60 = sphi 0, %s62
      %s63 = sphi 0, %s60
      %s64 = sphi 0, %s63
      %s80 = sphi 0, %s64
      %s86 = sphi 0, %s88
      %s89 = sphi 0, %s86
      %s90 = sphi 0, %s89
      %s106 = sphi 0, %s90
      %s112 = sphi 0, %s114
      %s115 = sphi 0, %s112
      %s116 = sphi 0, %s115
      %s132 = sphi 0, %s116
      %s136 = sphi 0, %s136
      %s138 = sphi 0, %s136
      %s139 = sphi 0, %s138
      %s153 = sphi 0, %s139
      %s157 = sphi 0, %s157
      %s159 = sphi 0, %s157
      %s160 = sphi 0, %s159
      %s174 = sphi 0, %s160
      %s178 = sphi 0, %s178
      %s180 = sphi 0, %s178
      %s181 = sphi 0, %s180
      %s195 = sphi 0, %s181
      %s199 = sphi 0, %s199
      %s201 = sphi 0, %s199
      %s202 = sphi 0, %s201
      %s216 = sphi 0, %s202
      %s220 = sphi 0, %s220
      %s222 = sphi 0, %s220
      %s223 = sphi 0, %s222
      %s237 = sphi 0, %s223
      %s241 = sphi 0, %s241
      %s243 = sphi 0, %s241
      %s244 = sphi 0, %s243
      %s258 = sphi 0, %s244
      %s262 = sphi 0, %s262
      %s264 = sphi 0, %s262
      %s265 = sphi 0, %s264
      %s279 = sphi 0, %s265
      %s283 = sphi 0, %s283
      %s285 = sphi 0, %s283
      %s286 = sphi 0, %s285
      %s300 = sphi 0, %s286
      %s304 = sphi 0, %s304
      %s306 = sphi 0, %s304
      %s307 = sphi 0, %s306
      %s321 = sphi 0, %s307
      %s325 = sphi 0, %s325
      %s327 = sphi 0, %s325
      %s328 = sphi 0, %s327
      %s342 = sphi 0, %s328
      %s346 = sphi 0, %s346
      %s348 = sphi 0, %s346
      %s349 = sphi 0, %s348
      %s363 = sphi 0, %s349
      %s369 = sphi 0, %s371
      %s372 = sphi 0, %s369
      %s373 = sphi 0, %s372
      %s389 = sphi 0, %s373
    $region4: #{rrg_forward.1} parent=1 // loop_header_branch
      %27 = sbr.rel (%p25) target = $region8
    $region5: #{rrg_forward.1} parent=1 // loop_body
      %s29 = ssub.s32 %s24, 1
      %s30 = ssub.s32 %s24, 2
      %s31 = sadd.s32 %s24, 1
      %s32 = ssub.s32 %s24, %s31
      %p33 = scmp.eq.s32.totalorder %s32, 0
      %s35 = sadd.s32 %s34, 1
      %s36 = scalar_select %p33, %s34, %s35
      %p39 = pneg %p33
      %p40 = scmp.eq.s32.totalorder %s24, 1
      %p41 = por %p39, %p40
      %p42 = scmp.ne.s32.totalorder %s34, %s37
      %p43 = scmp.eq.s32.totalorder %s24, 0
      %p44 = por %p42, %p43
      %p45 = scmp.ne.s32.totalorder %s34, %s37
      %p46 = scmp.eq.s32.totalorder %s29, 1
      %p47 = por %p45, %p46
      %p48 = scmp.ne.s32.totalorder %s37, %s38
      %p49 = scmp.eq.s32.totalorder %s29, 0
      %p50 = por %p48, %p49
      %p51 = scmp.ne.s32.totalorder %s37, %s38
      %p52 = scmp.eq.s32.totalorder %s30, 1
      %p53 = por %p51, %p52
      %p55 = scmp.ne.s32.totalorder %s38, %s54
      %p56 = scmp.eq.s32.totalorder %s30, 0
      %p57 = por %p55, %p56
      %s58 = ssub.s32 %s24, %s31
      %p59 = scmp.eq.s32.totalorder %s58, 0
      %s61 = sadd.s32 %s60, 1
      %s62 = scalar_select %p59, %s60, %s61
      %p65 = pneg %p59
      %p66 = scmp.eq.s32.totalorder %s24, 1
      %p67 = por %p65, %p66
      %p68 = scmp.ne.s32.totalorder %s60, %s63
      %p69 = scmp.eq.s32.totalorder %s24, 0
      %p70 = por %p68, %p69
      %p71 = scmp.ne.s32.totalorder %s60, %s63
      %p72 = scmp.eq.s32.totalorder %s29, 1
      %p73 = por %p71, %p72
      %p74 = scmp.ne.s32.totalorder %s63, %s64
      %p75 = scmp.eq.s32.totalorder %s29, 0
      %p76 = por %p74, %p75
      %p77 = scmp.ne.s32.totalorder %s63, %s64
      %p78 = scmp.eq.s32.totalorder %s30, 1
      %p79 = por %p77, %p78
      %p81 = scmp.ne.s32.totalorder %s64, %s80
      %p82 = scmp.eq.s32.totalorder %s30, 0
      %p83 = por %p81, %p82
      %s84 = ssub.s32 %s24, %s31
      %p85 = scmp.eq.s32.totalorder %s84, 0
      %s87 = sadd.s32 %s86, 1
      %s88 = scalar_select %p85, %s86, %s87
      %p91 = pneg %p85
      %p92 = scmp.eq.s32.totalorder %s24, 1
      %p93 = por %p91, %p92
      %p94 = scmp.ne.s32.totalorder %s86, %s89
      %p95 = scmp.eq.s32.totalorder %s24, 0
      %p96 = por %p94, %p95
      %p97 = scmp.ne.s32.totalorder %s86, %s89
      %p98 = scmp.eq.s32.totalorder %s29, 1
      %p99 = por %p97, %p98
      %p100 = scmp.ne.s32.totalorder %s89, %s90
      %p101 = scmp.eq.s32.totalorder %s29, 0
      %p102 = por %p100, %p101
      %p103 = scmp.ne.s32.totalorder %s89, %s90
      %p104 = scmp.eq.s32.totalorder %s30, 1
      %p105 = por %p103, %p104
      %p107 = scmp.ne.s32.totalorder %s90, %s106
      %p108 = scmp.eq.s32.totalorder %s30, 0
      %p109 = por %p107, %p108
      %s110 = ssub.s32 %s24, %s31
      %p111 = scmp.eq.s32.totalorder %s110, 0
      %s113 = sadd.s32 %s112, 1
      %s114 = scalar_select %p111, %s112, %s113
      %p117 = pneg %p111
      %p118 = scmp.eq.s32.totalorder %s24, 1
      %p119 = por %p117, %p118
      %p120 = scmp.ne.s32.totalorder %s112, %s115
      %p121 = scmp.eq.s32.totalorder %s24, 0
      %p122 = por %p120, %p121
      %p123 = scmp.ne.s32.totalorder %s112, %s115
      %p124 = scmp.eq.s32.totalorder %s29, 1
      %p125 = por %p123, %p124
      %p126 = scmp.ne.s32.totalorder %s115, %s116
      %p127 = scmp.eq.s32.totalorder %s29, 0
      %p128 = por %p126, %p127
      %p129 = scmp.ne.s32.totalorder %s115, %s116
      %p130 = scmp.eq.s32.totalorder %s30, 1
      %p131 = por %p129, %p130
      %p133 = scmp.ne.s32.totalorder %s116, %s132
      %p134 = scmp.eq.s32.totalorder %s30, 0
      %p135 = por %p133, %p134
      %s137 = sadd.s32 %s136, 1
      %p140 = scmp.eq.s32.totalorder %s24, 1
      %p141 = scmp.ne.s32.totalorder %s136, %s138
      %p142 = scmp.eq.s32.totalorder %s24, 0
      %p143 = por %p141, %p142
      %p144 = scmp.ne.s32.totalorder %s136, %s138
      %p145 = scmp.eq.s32.totalorder %s29, 1
      %p146 = por %p144, %p145
      %p147 = scmp.ne.s32.totalorder %s138, %s139
      %p148 = scmp.eq.s32.totalorder %s29, 0
      %p149 = por %p147, %p148
      %p150 = scmp.ne.s32.totalorder %s138, %s139
      %p151 = scmp.eq.s32.totalorder %s30, 1
      %p152 = por %p150, %p151
      %p154 = scmp.ne.s32.totalorder %s139, %s153
      %p155 = scmp.eq.s32.totalorder %s30, 0
      %p156 = por %p154, %p155
      %s158 = sadd.s32 %s157, 1
      %p161 = scmp.eq.s32.totalorder %s24, 1
      %p162 = scmp.ne.s32.totalorder %s157, %s159
      %p163 = scmp.eq.s32.totalorder %s24, 0
      %p164 = por %p162, %p163
      %p165 = scmp.ne.s32.totalorder %s157, %s159
      %p166 = scmp.eq.s32.totalorder %s29, 1
      %p167 = por %p165, %p166
      %p168 = scmp.ne.s32.totalorder %s159, %s160
      %p169 = scmp.eq.s32.totalorder %s29, 0
      %p170 = por %p168, %p169
      %p171 = scmp.ne.s32.totalorder %s159, %s160
      %p172 = scmp.eq.s32.totalorder %s30, 1
      %p173 = por %p171, %p172
      %p175 = scmp.ne.s32.totalorder %s160, %s174
      %p176 = scmp.eq.s32.totalorder %s30, 0
      %p177 = por %p175, %p176
      %s179 = sadd.s32 %s178, 1
      %p182 = scmp.eq.s32.totalorder %s24, 1
      %p183 = scmp.ne.s32.totalorder %s178, %s180
      %p184 = scmp.eq.s32.totalorder %s24, 0
      %p185 = por %p183, %p184
      %p186 = scmp.ne.s32.totalorder %s178, %s180
      %p187 = scmp.eq.s32.totalorder %s29, 1
      %p188 = por %p186, %p187
      %p189 = scmp.ne.s32.totalorder %s180, %s181
      %p190 = scmp.eq.s32.totalorder %s29, 0
      %p191 = por %p189, %p190
      %p192 = scmp.ne.s32.totalorder %s180, %s181
      %p193 = scmp.eq.s32.totalorder %s30, 1
      %p194 = por %p192, %p193
      %p196 = scmp.ne.s32.totalorder %s181, %s195
      %p197 = scmp.eq.s32.totalorder %s30, 0
      %p198 = por %p196, %p197
      %s200 = sadd.s32 %s199, 1
      %p203 = scmp.eq.s32.totalorder %s24, 1
      %p204 = scmp.ne.s32.totalorder %s199, %s201
      %p205 = scmp.eq.s32.totalorder %s24, 0
      %p206 = por %p204, %p205
      %p207 = scmp.ne.s32.totalorder %s199, %s201
      %p208 = scmp.eq.s32.totalorder %s29, 1
      %p209 = por %p207, %p208
      %p210 = scmp.ne.s32.totalorder %s201, %s202
      %p211 = scmp.eq.s32.totalorder %s29, 0
      %p212 = por %p210, %p211
      %p213 = scmp.ne.s32.totalorder %s201, %s202
      %p214 = scmp.eq.s32.totalorder %s30, 1
      %p215 = por %p213, %p214
      %p217 = scmp.ne.s32.totalorder %s202, %s216
      %p218 = scmp.eq.s32.totalorder %s30, 0
      %p219 = por %p217, %p218
      %s221 = sadd.s32 %s220, 1
      %p224 = scmp.eq.s32.totalorder %s24, 1
      %p225 = scmp.ne.s32.totalorder %s220, %s222
      %p226 = scmp.eq.s32.totalorder %s24, 0
      %p227 = por %p225, %p226
      %p228 = scmp.ne.s32.totalorder %s220, %s222
      %p229 = scmp.eq.s32.totalorder %s29, 1
      %p230 = por %p228, %p229
      %p231 = scmp.ne.s32.totalorder %s222, %s223
      %p232 = scmp.eq.s32.totalorder %s29, 0
      %p233 = por %p231, %p232
      %p234 = scmp.ne.s32.totalorder %s222, %s223
      %p235 = scmp.eq.s32.totalorder %s30, 1
      %p236 = por %p234, %p235
      %p238 = scmp.ne.s32.totalorder %s223, %s237
      %p239 = scmp.eq.s32.totalorder %s30, 0
      %p240 = por %p238, %p239
      %s242 = sadd.s32 %s241, 1
      %p245 = scmp.eq.s32.totalorder %s24, 1
      %p246 = scmp.ne.s32.totalorder %s241, %s243
      %p247 = scmp.eq.s32.totalorder %s24, 0
      %p248 = por %p246, %p247
      %p249 = scmp.ne.s32.totalorder %s241, %s243
      %p250 = scmp.eq.s32.totalorder %s29, 1
      %p251 = por %p249, %p250
      %p252 = scmp.ne.s32.totalorder %s243, %s244
      %p253 = scmp.eq.s32.totalorder %s29, 0
      %p254 = por %p252, %p253
      %p255 = scmp.ne.s32.totalorder %s243, %s244
      %p256 = scmp.eq.s32.totalorder %s30, 1
      %p257 = por %p255, %p256
      %p259 = scmp.ne.s32.totalorder %s244, %s258
      %p260 = scmp.eq.s32.totalorder %s30, 0
      %p261 = por %p259, %p260
      %s263 = sadd.s32 %s262, 1
      %p266 = scmp.eq.s32.totalorder %s24, 1
      %p267 = scmp.ne.s32.totalorder %s262, %s264
      %p268 = scmp.eq.s32.totalorder %s24, 0
      %p269 = por %p267, %p268
      %p270 = scmp.ne.s32.totalorder %s262, %s264
      %p271 = scmp.eq.s32.totalorder %s29, 1
      %p272 = por %p270, %p271
      %p273 = scmp.ne.s32.totalorder %s264, %s265
      %p274 = scmp.eq.s32.totalorder %s29, 0
      %p275 = por %p273, %p274
      %p276 = scmp.ne.s32.totalorder %s264, %s265
      %p277 = scmp.eq.s32.totalorder %s30, 1
      %p278 = por %p276, %p277
      %p280 = scmp.ne.s32.totalorder %s265, %s279
      %p281 = scmp.eq.s32.totalorder %s30, 0
      %p282 = por %p280, %p281
      %s284 = sadd.s32 %s283, 1
      %p287 = scmp.eq.s32.totalorder %s24, 1
      %p288 = scmp.ne.s32.totalorder %s283, %s285
      %p289 = scmp.eq.s32.totalorder %s24, 0
      %p290 = por %p288, %p289
      %p291 = scmp.ne.s32.totalorder %s283, %s285
      %p292 = scmp.eq.s32.totalorder %s29, 1
      %p293 = por %p291, %p292
      %p294 = scmp.ne.s32.totalorder %s285, %s286
      %p295 = scmp.eq.s32.totalorder %s29, 0
      %p296 = por %p294, %p295
      %p297 = scmp.ne.s32.totalorder %s285, %s286
      %p298 = scmp.eq.s32.totalorder %s30, 1
      %p299 = por %p297, %p298
      %p301 = scmp.ne.s32.totalorder %s286, %s300
      %p302 = scmp.eq.s32.totalorder %s30, 0
      %p303 = por %p301, %p302
      %s305 = sadd.s32 %s304, 1
      %p308 = scmp.eq.s32.totalorder %s24, 1
      %p309 = scmp.ne.s32.totalorder %s304, %s306
      %p310 = scmp.eq.s32.totalorder %s24, 0
      %p311 = por %p309, %p310
      %p312 = scmp.ne.s32.totalorder %s304, %s306
      %p313 = scmp.eq.s32.totalorder %s29, 1
      %p314 = por %p312, %p313
      %p315 = scmp.ne.s32.totalorder %s306, %s307
      %p316 = scmp.eq.s32.totalorder %s29, 0
      %p317 = por %p315, %p316
      %p318 = scmp.ne.s32.totalorder %s306, %s307
      %p319 = scmp.eq.s32.totalorder %s30, 1
      %p320 = por %p318, %p319
      %p322 = scmp.ne.s32.totalorder %s307, %s321
      %p323 = scmp.eq.s32.totalorder %s30, 0
      %p324 = por %p322, %p323
      %s326 = sadd.s32 %s325, 1
      %p329 = scmp.eq.s32.totalorder %s24, 1
      %p330 = scmp.ne.s32.totalorder %s325, %s327
      %p331 = scmp.eq.s32.totalorder %s24, 0
      %p332 = por %p330, %p331
      %p333 = scmp.ne.s32.totalorder %s325, %s327
      %p334 = scmp.eq.s32.totalorder %s29, 1
      %p335 = por %p333, %p334
      %p336 = scmp.ne.s32.totalorder %s327, %s328
      %p337 = scmp.eq.s32.totalorder %s29, 0
      %p338 = por %p336, %p337
      %p339 = scmp.ne.s32.totalorder %s327, %s328
      %p340 = scmp.eq.s32.totalorder %s30, 1
      %p341 = por %p339, %p340
      %p343 = scmp.ne.s32.totalorder %s328, %s342
      %p344 = scmp.eq.s32.totalorder %s30, 0
      %p345 = por %p343, %p344
      %s347 = sadd.s32 %s346, 1
      %p350 = scmp.eq.s32.totalorder %s24, 1
      %p351 = scmp.ne.s32.totalorder %s346, %s348
      %p352 = scmp.eq.s32.totalorder %s24, 0
      %p353 = por %p351, %p352
      %p354 = scmp.ne.s32.totalorder %s346, %s348
      %p355 = scmp.eq.s32.totalorder %s29, 1
      %p356 = por %p354, %p355
      %p357 = scmp.ne.s32.totalorder %s348, %s349
      %p358 = scmp.eq.s32.totalorder %s29, 0
      %p359 = por %p357, %p358
      %p360 = scmp.ne.s32.totalorder %s348, %s349
      %p361 = scmp.eq.s32.totalorder %s30, 1
      %p362 = por %p360, %p361
      %p364 = scmp.ne.s32.totalorder %s349, %s363
      %p365 = scmp.eq.s32.totalorder %s30, 0
      %p366 = por %p364, %p365
      %s367 = ssub.s32 %s24, %s31
      %p368 = scmp.eq.s32.totalorder %s367, 0
      %s370 = sadd.s32 %s369, 1
      %s371 = scalar_select %p368, %s369, %s370
      %p374 = pneg %p368
      %p375 = scmp.eq.s32.totalorder %s24, 1
      %p376 = por %p374, %p375
      %p377 = scmp.ne.s32.totalorder %s369, %s372
      %p378 = scmp.eq.s32.totalorder %s24, 0
      %p379 = por %p377, %p378
      %p380 = scmp.ne.s32.totalorder %s369, %s372
      %p381 = scmp.eq.s32.totalorder %s29, 1
      %p382 = por %p380, %p381
      %p383 = scmp.ne.s32.totalorder %s372, %s373
      %p384 = scmp.eq.s32.totalorder %s29, 0
      %p385 = por %p383, %p384
      %p386 = scmp.ne.s32.totalorder %s372, %s373
      %p387 = scmp.eq.s32.totalorder %s30, 1
      %p388 = por %p386, %p387
      %p390 = scmp.ne.s32.totalorder %s373, %s389
      %p391 = scmp.eq.s32.totalorder %s30, 0
      %p392 = por %p390, %p391
      %p393 = scmp.le.s32.totalorder 1, %s24
      %p394 = scmp.lt.s32.totalorder %s24, 3
      %p395 = pnand %p393, %p394
      %p396 = pneg %p395
      // Predicated region
      $region9: #{rrg_forward.1} parent=5 // pred_check
        _
      $region10: #{rrg_forward.1} parent=5 // pred_check_branch
        %398 = sbr.rel (%p395) target = $region12
      $region11: #{rrg_forward.1} parent=5 // pred_region
        %s399 = ssub.s32 %s24, 1
        // Predicated region
        $region13: #{rrg_forward.1} parent=11 // pred_check
          %p400 = pneg %p149
        $region14: #{rrg_forward.1} parent=11 // pred_check_branch
          %402 = sbr.rel (%p400) target = $region16
        $region15: #{rrg_forward.1} parent=11 // pred_region
          _
        $region16: #{rrg_forward.1} parent=11 // pred_fallthru
          _
        // Predicated region
        $region17: #{rrg_forward.1} parent=11 // pred_check
          %p403 = pneg %p170
        $region18: #{rrg_forward.1} parent=11 // pred_check_branch
          %405 = sbr.rel (%p403) target = $region20
        $region19: #{rrg_forward.1} parent=11 // pred_region
          _
        $region20: #{rrg_forward.1} parent=11 // pred_fallthru
          _
        // Predicated region
        $region21: #{rrg_forward.1} parent=11 // pred_check
          %p406 = pneg %p191
        $region22: #{rrg_forward.1} parent=11 // pred_check_branch
          %408 = sbr.rel (%p406) target = $region24
        $region23: #{rrg_forward.1} parent=11 // pred_region
          _
        $region24: #{rrg_forward.1} parent=11 // pred_fallthru
          _
        // Predicated region
        $region25: #{rrg_forward.1} parent=11 // pred_check
          %p409 = pneg %p212
        $region26: #{rrg_forward.1} parent=11 // pred_check_branch
          %411 = sbr.rel (%p409) target = $region28
        $region27: #{rrg_forward.1} parent=11 // pred_region
          _
        $region28: #{rrg_forward.1} parent=11 // pred_fallthru
          _
        // Predicated region
        $region29: #{rrg_forward.1} parent=11 // pred_check
          %p412 = pneg %p233
        $region30: #{rrg_forward.1} parent=11 // pred_check_branch
          %414 = sbr.rel (%p412) target = $region32
        $region31: #{rrg_forward.1} parent=11 // pred_region
          _
        $region32: #{rrg_forward.1} parent=11 // pred_fallthru
          _
        // Predicated region
        $region33: #{rrg_forward.1} parent=11 // pred_check
          %p415 = pneg %p254
        $region34: #{rrg_forward.1} parent=11 // pred_check_branch
          %417 = sbr.rel (%p415) target = $region36
        $region35: #{rrg_forward.1} parent=11 // pred_region
          _
        $region36: #{rrg_forward.1} parent=11 // pred_fallthru
          _
        // Predicated region
        $region37: #{rrg_forward.1} parent=11 // pred_check
          %p418 = pneg %p275
        $region38: #{rrg_forward.1} parent=11 // pred_check_branch
          %420 = sbr.rel (%p418) target = $region40
        $region39: #{rrg_forward.1} parent=11 // pred_region
          _
        $region40: #{rrg_forward.1} parent=11 // pred_fallthru
          _
        // Predicated region
        $region41: #{rrg_forward.1} parent=11 // pred_check
          %p421 = pneg %p296
        $region42: #{rrg_forward.1} parent=11 // pred_check_branch
          %423 = sbr.rel (%p421) target = $region44
        $region43: #{rrg_forward.1} parent=11 // pred_region
          _
        $region44: #{rrg_forward.1} parent=11 // pred_fallthru
          _
        // Predicated region
        $region45: #{rrg_forward.1} parent=11 // pred_check
          %p424 = pneg %p317
        $region46: #{rrg_forward.1} parent=11 // pred_check_branch
          %426 = sbr.rel (%p424) target = $region48
        $region47: #{rrg_forward.1} parent=11 // pred_region
          _
        $region48: #{rrg_forward.1} parent=11 // pred_fallthru
          _
        // Predicated region
        $region49: #{rrg_forward.1} parent=11 // pred_check
          %p427 = pneg %p338
        $region50: #{rrg_forward.1} parent=11 // pred_check_branch
          %429 = sbr.rel (%p427) target = $region52
        $region51: #{rrg_forward.1} parent=11 // pred_region
          _
        $region52: #{rrg_forward.1} parent=11 // pred_fallthru
          _
        // Predicated region
        $region53: #{rrg_forward.1} parent=11 // pred_check
          %p430 = pneg %p359
        $region54: #{rrg_forward.1} parent=11 // pred_check_branch
          %432 = sbr.rel (%p430) target = $region56
        $region55: #{rrg_forward.1} parent=11 // pred_region
          _
        $region56: #{rrg_forward.1} parent=11 // pred_fallthru
          _
      $region12: #{rrg_forward.1} parent=5 // pred_fallthru
        _
      %p433 = scmp.lt.s32.totalorder %s24, 2
      // Predicated region
      $region57: #{rrg_forward.1} parent=5 // pred_check
        %p434 = pneg %p433
      $region58: #{rrg_forward.1} parent=5 // pred_check_branch
        %436 = sbr.rel (%p434) target = $region60
      $region59: #{rrg_forward.1} parent=5 // pred_region
        // Predicated region
        $region61: #{rrg_forward.1} parent=59 // pred_check
          %p437 = pneg %p44
        $region62: #{rrg_forward.1} parent=59 // pred_check_branch
          %439 = sbr.rel (%p437) target = $region64
        $region63: #{rrg_forward.1} parent=59 // pred_region
          %p440 = scmp.lt.s32.totalorder %s24, 1
          %s441 = scalar_select %p440, %s24, 1
          %s442 = smul.addr %s441, 2
          %s443 = smul.addr %s442, 4
          %s444 = scalar_lea.vmem %s0, %s443
        $region64: #{rrg_forward.1} parent=59 // pred_fallthru
          _
        // Predicated region
        $region65: #{rrg_forward.1} parent=59 // pred_check
          %p445 = pneg %p70
        $region66: #{rrg_forward.1} parent=59 // pred_check_branch
          %447 = sbr.rel (%p445) target = $region68
        $region67: #{rrg_forward.1} parent=59 // pred_region
          %p448 = scmp.lt.s32.totalorder %s24, 1
          %s449 = scalar_select %p448, %s24, 1
          %s450 = smul.addr %s449, 8
          %s451 = scalar_lea.vmem %s1, %s450
        $region68: #{rrg_forward.1} parent=59 // pred_fallthru
          _
        // Predicated region
        $region69: #{rrg_forward.1} parent=59 // pred_check
          %p452 = pneg %p96
        $region70: #{rrg_forward.1} parent=59 // pred_check_branch
          %454 = sbr.rel (%p452) target = $region72
        $region71: #{rrg_forward.1} parent=59 // pred_region
          %p455 = scmp.lt.s32.totalorder %s24, 1
          %s456 = scalar_select %p455, %s24, 1
          %s457 = scalar_lea.vmem %s2, %s456
        $region72: #{rrg_forward.1} parent=59 // pred_fallthru
          _
        // Predicated region
        $region73: #{rrg_forward.1} parent=59 // pred_check
          %p458 = pneg %p122
        $region74: #{rrg_forward.1} parent=59 // pred_check_branch
          %460 = sbr.rel (%p458) target = $region76
        $region75: #{rrg_forward.1} parent=59 // pred_region
          %p461 = scmp.lt.s32.totalorder %s24, 1
          %s462 = scalar_select %p461, %s24, 1
          %s463 = scalar_lea.vmem %s3, %s462
        $region76: #{rrg_forward.1} parent=59 // pred_fallthru
          _
      $region60: #{rrg_forward.1} parent=5 // pred_fallthru
        _
      %p464 = scmp.le.s32.totalorder 1, %s24
      %p465 = scmp.lt.s32.totalorder %s24, 3
      %p466 = pnand %p464, %p465
      %p467 = pneg %p466
      // Predicated region
      $region77: #{rrg_forward.1} parent=5 // pred_check
        _
      $region78: #{rrg_forward.1} parent=5 // pred_check_branch
        %469 = sbr.rel (%p466) target = $region80
      $region79: #{rrg_forward.1} parent=5 // pred_region
        %s470 = ssub.s32 %s24, 1
        %p471 = scmp.lt.s32.totalorder %s29, 1
        %s472 = scalar_select %p471, %s29, 1
        %s473 = smul.addr %s472, 2
        %s474 = smul.addr %s473, 4
        %s475 = scalar_lea.vmem %s0, %s474
        %p476 = pneg %p50
        %p477 = pneg %p47
        %p478 = scmp.lt.s32.totalorder %s29, 1
        %s479 = scalar_select %p478, %s29, 1
        %s480 = smul.addr %s479, 8
        %s481 = scalar_lea.vmem %s1, %s480
        %p482 = pneg %p76
        %p483 = pneg %p73
        %p484 = scmp.lt.s32.totalorder %s29, 1
        %s485 = scalar_select %p484, %s29, 1
        %s486 = scalar_lea.vmem %s2, %s485
        %p487 = pneg %p102
        %p488 = pneg %p99
        %p489 = scmp.lt.s32.totalorder %s29, 1
        %s490 = scalar_select %p489, %s29, 1
        %s491 = scalar_lea.vmem %s3, %s490
        %p492 = pneg %p128
        %p493 = pneg %p125
        %p494 = pneg %p149
        %p495 = pneg %p146
        %p496 = pneg %p170
        %p497 = pneg %p167
        %p498 = pneg %p191
        %p499 = pneg %p188
        %p500 = pneg %p212
        %p501 = pneg %p209
        %p502 = pneg %p233
        %p503 = pneg %p230
        %p504 = pneg %p254
        %p505 = pneg %p251
        %p506 = pneg %p275
        %p507 = pneg %p272
        %p508 = pneg %p296
        %p509 = pneg %p293
        %p510 = pneg %p317
        %p511 = pneg %p314
        %p512 = pneg %p338
        %p513 = pneg %p335
        %p514 = pneg %p359
        %p515 = pneg %p356
        %p516 = pneg %p385
        %p517 = pneg %p382
        %s518 = sand.u32 %s372, 1
        %s519 = scalar_lea.sflag [#allocation3], %s518
        %s520 = sand.u32 %s372, 1
        %s521 = smul.addr %s520, 8
        %s522 = scalar_lea.vmem [#allocation2], %s521
        %p523 = scmp.lt.s32.totalorder %s29, 1
        %s524 = scalar_select %p523, %s29, 1
        %s525 = smul.addr %s524, 2
        %s526 = smul.addr %s525, 4
        %s527 = scalar_lea.vmem %s0, %s526
        %p528 = scmp.lt.s32.totalorder %s29, 1
        %s529 = scalar_select %p528, %s29, 1
        %s530 = smul.addr %s529, 8
        %s531 = scalar_lea.vmem %s1, %s530
        %p532 = scmp.lt.s32.totalorder %s29, 1
        %s533 = scalar_select %p532, %s29, 1
        %s534 = scalar_lea.vmem %s2, %s533
        %p535 = scmp.lt.s32.totalorder %s29, 1
        %s536 = scalar_select %p535, %s29, 1
        %s537 = scalar_lea.vmem %s3, %s536
        %v539 = vld [vmem:[%s14] sm:$0xff]
        %v540 = vld [vmem:[%s14 + $0x8] sm:$0x1]
        %v541 = vld [vmem:[%s527] sm:$0xf]
        %v542 = vld [vmem:[%s527 + $0x4] sm:$0xf]
        %v543 = vld [vmem:[%s4] sm:$0xf]
        %v544 = vld [vmem:[%s4 + $0x4] sm:$0xf]
        %v545 = vld [vmem:[%s4 + $0x8] sm:$0xf]
        %v546 = vld [vmem:[%s4 + $0xc] sm:$0xf]
        %v547 = vld [vmem:[%s4 + $0x10] sm:$0xf]
        %v548 = vld [vmem:[%s4 + $0x14] sm:$0xf]
        %v549 = vld [vmem:[%s4 + $0x18] sm:$0xf]
        %v550 = vld [vmem:[%s4 + $0x1c] sm:$0xf]
        %v551 = vld [vmem:[%s4 + $0x20] sm:$0xf]
        %v552 = vld [vmem:[%s4 + $0x24] sm:$0xf]
        %v553 = vld [vmem:[%s4 + $0x28] sm:$0xf]
        %v554 = vld [vmem:[%s4 + $0x2c] sm:$0xf]
        %v555 = vld [vmem:[%s4 + $0x30] sm:$0xf]
        %v556 = vld [vmem:[%s4 + $0x34] sm:$0xf]
        %v557 = vld [vmem:[%s4 + $0x38] sm:$0xf]
        %v558 = vld [vmem:[%s4 + $0x3c] sm:$0xf]
        %v559 = vlaneseq
        %v560 = vshrl.u32 %v559, 7
        %v561 = vsub.s32 0, %v560
        %v562 = vrot.slane %v539, %v561
        %v565 = vunpack.c.l.b16 %v541
        %v566 = vunpack.c.l.b16 %v542
        %v567 = vpack.c.b16 %v566, %v565
        %v585 = vunpack.c.l.b16 %v543
        %v586 = vunpack.c.l.b16 %v544
        %v587 = vunpack.c.l.b16 %v545
        %v588 = vunpack.c.l.b16 %v546
        %v589 = vunpack.c.l.b16 %v547
        %v590 = vunpack.c.l.b16 %v548
        %v591 = vunpack.c.l.b16 %v549
        %v592 = vunpack.c.l.b16 %v550
        %v593 = vunpack.c.l.b16 %v551
        %v594 = vunpack.c.l.b16 %v552
        %v595 = vunpack.c.l.b16 %v553
        %v596 = vunpack.c.l.b16 %v554
        %v597 = vunpack.c.l.b16 %v555
        %v598 = vunpack.c.l.b16 %v556
        %v599 = vunpack.c.l.b16 %v557
        %v600 = vunpack.c.l.b16 %v558
        %v601 = vpack.c.b16 %v586, %v585
        %v602 = vpack.c.b16 %v588, %v587
        %v603 = vpack.c.b16 %v590, %v589
        %v604 = vpack.c.b16 %v592, %v591
        %v605 = vpack.c.b16 %v594, %v593
        %v606 = vpack.c.b16 %v596, %v595
        %v607 = vpack.c.b16 %v598, %v597
        %v608 = vpack.c.b16 %v600, %v599
        %617 = vmatprep.subr.bf16.mxu0 0
        %618 = vmatpush1.bf16.msra.mxu0 %v601
        %619 = vmatprep.subr.bf16.mxu0 0
        %620 = vmatpush1.bf16.msra.mxu0 %v602
        %621 = vmatprep.subr.bf16.mxu0 0
        %622 = vmatpush1.bf16.msra.mxu0 %v603
        %623 = vmatprep.subr.bf16.mxu0 0
        %624 = vmatpush1.bf16.msra.mxu0 %v604
        %625 = vmatprep.subr.bf16.mxu0 0
        %626 = vmatpush1.bf16.msra.mxu0 %v605
        %627 = vmatprep.subr.bf16.mxu0 0
        %628 = vmatpush1.bf16.msra.mxu0 %v606
        %629 = vmatprep.subr.bf16.mxu0 0
        %630 = vmatpush1.bf16.msra.mxu0 %v607
        %631 = vmatprep.subr.bf16.mxu0 0
        %632 = vmatpush1.bf16.msra.mxu0 %v608
        %633 = vmatprep.subr.bf16.mxu0 0
        %634 = vmatpush1.bf16.msra.mxu0 0
        %635 = vmatprep.subr.bf16.mxu0 0
        %636 = vmatpush1.bf16.msra.mxu0 0
        %637 = vmatprep.subr.bf16.mxu0 0
        %638 = vmatpush1.bf16.msra.mxu0 0
        %639 = vmatprep.subr.bf16.mxu0 0
        %640 = vmatpush1.bf16.msra.mxu0 0
        %641 = vmatprep.subr.bf16.mxu0 0
        %642 = vmatpush1.bf16.msra.mxu0 0
        %643 = vmatprep.subr.bf16.mxu0 0
        %644 = vmatpush1.bf16.msra.mxu0 0
        %645 = vmatprep.subr.bf16.mxu0 0
        %646 = vmatpush1.bf16.msra.mxu0 0
        %647 = vmatprep.subr.bf16.mxu0 0
        %648 = vmatpush1.bf16.msra.mxu0 0
        %649 = vmatprep.mubr.bf16.mxu0 0
        %650 = vmatmul.mubr.bf16.gmra.mrb[0].mxu0 %v567
        %v651 = vpop.f32.mrb[0].mxu0
        %v652 = vadd.f32 %v562, %v651
        %v653 = vpop.f32.mrb[0].mxu0
        %v654 = vpop.f32.mrb[0].mxu0
        %v655 = vadd.f32 %v562, %v654
        %v656 = vpop.f32.mrb[0].mxu0
        %657 = vdwg.mxu0
        %v658 = vmax.f32 %v652, 0.0
        %v659 = vmax.f32 %v655, 0.0
        %v660 = vpack.c.bf16 %v659, %v658
        %v661 = vld [vmem:[%s531] sm:$0xff]
        %v662 = vpack.c.bf16 %v661, %v661
        %v663 = vlaneseq
        %v664 = vshrl.u32 %v663, 7
        %v665 = vlaneseq
        %v666 = vand.u32 %v665, 127
        %vm667 = vcmp.le.s32.totalorder %v666, %v664
        %v668 = vld [vmem:[%s534] sm:$0x1]
        %vm669 = vcmp.gt.f32.partialorder %v668, 0.5
        %v670 = vsel %vm669, 1, 0
        %v671 = vlaneseq
        %v672 = vshrl.u32 %v671, 7
        %v673 = vsub.s32 0, %v672
        %v674 = vrot.slane %v670, %v673
        %vm675 = vcmp.eq.s32.totalorder %v674, 1
        %vm676 = vmand %vm667, %vm675
        %v677 = vsel %vm676, 0.0, -1e+09
        %v678 = vld [vmem:[%s537] sm:$0x1]
        %vm679 = vcmp.gt.f32.partialorder %v678, 0.5
        %v680 = vsel %vm679, 0.0, -1e+09
        %v681 = vld [vmem:[%s5] sm:$0xff]
        %v682 = vld [vmem:[%s5 + $0x8] sm:$0xf]
        %v683 = vld [vmem:[%s5 + $0xc] sm:$0xff]
        %v684 = vld [vmem:[%s5 + $0x14] sm:$0xf]
        %v685 = vld [vmem:[%s5 + $0x18] sm:$0xff]
        %v686 = vld [vmem:[%s5 + $0x20] sm:$0xf]
        %v687 = vld [vmem:[%s5 + $0x24] sm:$0xff]
        %v688 = vld [vmem:[%s5 + $0x2c] sm:$0xf]
        %v689 = vld [vmem:[%s5 + $0x30] sm:$0xff]
        %v690 = vld [vmem:[%s5 + $0x38] sm:$0xf]
        %v691 = vld [vmem:[%s5 + $0x3c] sm:$0xff]
        %v692 = vld [vmem:[%s5 + $0x44] sm:$0xf]
        %v693 = vld [vmem:[%s5 + $0x48] sm:$0xff]
        %v694 = vld [vmem:[%s5 + $0x50] sm:$0xf]
        %v695 = vld [vmem:[%s5 + $0x54] sm:$0xff]
        %v696 = vld [vmem:[%s5 + $0x5c] sm:$0xf]
        %v697 = vld [vmem:[%s5 + $0x60] sm:$0xff]
        %v698 = vld [vmem:[%s5 + $0x68] sm:$0xf]
        %v699 = vld [vmem:[%s5 + $0x6c] sm:$0xff]
        %v700 = vld [vmem:[%s5 + $0x74] sm:$0xf]
        %v701 = vld [vmem:[%s5 + $0x78] sm:$0xff]
        %v702 = vld [vmem:[%s5 + $0x80] sm:$0xf]
        %v703 = vld [vmem:[%s5 + $0x84] sm:$0xff]
        %v704 = vld [vmem:[%s5 + $0x8c] sm:$0xf]
        %v705 = vld [vmem:[%s5 + $0x90] sm:$0xff]
        %v706 = vld [vmem:[%s5 + $0x98] sm:$0xf]
        %v707 = vld [vmem:[%s5 + $0x9c] sm:$0xff]
        %v708 = vld [vmem:[%s5 + $0xa4] sm:$0xf]
        %v709 = vld [vmem:[%s5 + $0xa8] sm:$0xff]
        %v710 = vld [vmem:[%s5 + $0xb0] sm:$0xf]
        %v711 = vld [vmem:[%s5 + $0xb4] sm:$0xff]
        %v712 = vld [vmem:[%s5 + $0xbc] sm:$0xf]
        %v745 = vunpack.c.l.b16 %v681
        %v746 = vunpack.c.h.b16 %v681
        %v747 = vunpack.c.l.b16 %v682
        %v748 = vunpack.c.l.b16 %v683
        %v749 = vunpack.c.h.b16 %v683
        %v750 = vunpack.c.l.b16 %v684
        %v751 = vunpack.c.l.b16 %v685
        %v752 = vunpack.c.h.b16 %v685
        %v753 = vunpack.c.l.b16 %v686
        %v754 = vunpack.c.l.b16 %v687
        %v755 = vunpack.c.h.b16 %v687
        %v756 = vunpack.c.l.b16 %v688
        %v757 = vunpack.c.l.b16 %v689
        %v758 = vunpack.c.h.b16 %v689
        %v759 = vunpack.c.l.b16 %v690
        %v760 = vunpack.c.l.b16 %v691
        %v761 = vunpack.c.h.b16 %v691
        %v762 = vunpack.c.l.b16 %v692
        %v763 = vunpack.c.l.b16 %v693
        %v764 = vunpack.c.h.b16 %v693
        %v765 = vunpack.c.l.b16 %v694
        %v766 = vunpack.c.l.b16 %v695
        %v767 = vunpack.c.h.b16 %v695
        %v768 = vunpack.c.l.b16 %v696
        %v769 = vunpack.c.l.b16 %v697
        %v770 = vunpack.c.h.b16 %v697
        %v771 = vunpack.c.l.b16 %v698
        %v772 = vunpack.c.l.b16 %v699
        %v773 = vunpack.c.h.b16 %v699
        %v774 = vunpack.c.l.b16 %v700
        %v775 = vunpack.c.l.b16 %v701
        %v776 = vunpack.c.h.b16 %v701
        %v777 = vunpack.c.l.b16 %v702
        %v778 = vunpack.c.l.b16 %v703
        %v779 = vunpack.c.h.b16 %v703
        %v780 = vunpack.c.l.b16 %v704
        %v781 = vunpack.c.l.b16 %v705
        %v782 = vunpack.c.h.b16 %v705
        %v783 = vunpack.c.l.b16 %v706
        %v784 = vunpack.c.l.b16 %v707
        %v785 = vunpack.c.h.b16 %v707
        %v786 = vunpack.c.l.b16 %v708
        %v787 = vunpack.c.l.b16 %v709
        %v788 = vunpack.c.h.b16 %v709
        %v789 = vunpack.c.l.b16 %v710
        %v790 = vunpack.c.l.b16 %v711
        %v791 = vunpack.c.h.b16 %v711
        %v792 = vunpack.c.l.b16 %v712
        %v793 = vpack.c.b16 %v748, %v745
        %v794 = vpack.c.b16 %v749, %v746
        %v795 = vpack.c.b16 %v750, %v747
        %v796 = vpack.c.b16 %v754, %v751
        %v797 = vpack.c.b16 %v755, %v752
        %v798 = vpack.c.b16 %v756, %v753
        %v799 = vpack.c.b16 %v760, %v757
        %v800 = vpack.c.b16 %v761, %v758
        %v801 = vpack.c.b16 %v762, %v759
        %v802 = vpack.c.b16 %v766, %v763
        %v803 = vpack.c.b16 %v767, %v764
        %v804 = vpack.c.b16 %v768, %v765
        %v805 = vpack.c.b16 %v772, %v769
        %v806 = vpack.c.b16 %v773, %v770
        %v807 = vpack.c.b16 %v774, %v771
        %v808 = vpack.c.b16 %v778, %v775
        %v809 = vpack.c.b16 %v779, %v776
        %v810 = vpack.c.b16 %v780, %v777
        %v811 = vpack.c.b16 %v784, %v781
        %v812 = vpack.c.b16 %v785, %v782
        %v813 = vpack.c.b16 %v786, %v783
        %v814 = vpack.c.b16 %v790, %v787
        %v815 = vpack.c.b16 %v791, %v788
        %v816 = vpack.c.b16 %v792, %v789
        %841 = vmatprep.subr.bf16.mxu0 %v794
        %842 = vmatpush1.bf16.msra.mxu0 %v793
        %843 = vmatprep.subr.bf16.mxu0 %v797
        %844 = vmatpush1.bf16.msra.mxu0 %v796
        %845 = vmatprep.subr.bf16.mxu0 %v800
        %846 = vmatpush1.bf16.msra.mxu0 %v799
        %847 = vmatprep.subr.bf16.mxu0 %v803
        %848 = vmatpush1.bf16.msra.mxu0 %v802
        %849 = vmatprep.subr.bf16.mxu0 %v806
        %850 = vmatpush1.bf16.msra.mxu0 %v805
        %851 = vmatprep.subr.bf16.mxu0 %v809
        %852 = vmatpush1.bf16.msra.mxu0 %v808
        %853 = vmatprep.subr.bf16.mxu0 %v812
        %854 = vmatpush1.bf16.msra.mxu0 %v811
        %855 = vmatprep.subr.bf16.mxu0 %v815
        %856 = vmatpush1.bf16.msra.mxu0 %v814
        %857 = vmatprep.subr.bf16.mxu0 0
        %858 = vmatpush1.bf16.msra.mxu0 0
        %859 = vmatprep.subr.bf16.mxu0 0
        %860 = vmatpush1.bf16.msra.mxu0 0
        %861 = vmatprep.subr.bf16.mxu0 0
        %862 = vmatpush1.bf16.msra.mxu0 0
        %863 = vmatprep.subr.bf16.mxu0 0
        %864 = vmatpush1.bf16.msra.mxu0 0
        %865 = vmatprep.subr.bf16.mxu0 0
        %866 = vmatpush1.bf16.msra.mxu0 0
        %867 = vmatprep.subr.bf16.mxu0 0
        %868 = vmatpush1.bf16.msra.mxu0 0
        %869 = vmatprep.subr.bf16.mxu0 0
        %870 = vmatpush1.bf16.msra.mxu0 0
        %871 = vmatprep.subr.bf16.mxu0 0
        %872 = vmatpush1.bf16.msra.mxu0 0
        %873 = vmatprep.mubr.bf16.mxu0 0
        %874 = vmatmul.mubr.bf16.gmra.mrb[0].mxu0 %v662
        %v875 = vpop.f32.mrb[0].mxu0
        %v876 = vadd.f32 0.0, %v875
        %v877 = vpop.f32.mrb[0].mxu0
        %v878 = vadd.f32 0.0, %v877
        %v879 = vpop.f32.mrb[0].mxu0
        %v880 = vpop.f32.mrb[0].mxu0
        %881 = vdwg.mxu0
        %882 = vmatprep.subr.bf16.mxu0 0
        %883 = vmatpush1.bf16.msra.mxu0 %v795
        %884 = vmatprep.subr.bf16.mxu0 0
        %885 = vmatpush1.bf16.msra.mxu0 %v798
        %886 = vmatprep.subr.bf16.mxu0 0
        %887 = vmatpush1.bf16.msra.mxu0 %v801
        %888 = vmatprep.subr.bf16.mxu0 0
        %889 = vmatpush1.bf16.msra.mxu0 %v804
        %890 = vmatprep.subr.bf16.mxu0 0
        %891 = vmatpush1.bf16.msra.mxu0 %v807
        %892 = vmatprep.subr.bf16.mxu0 0
        %893 = vmatpush1.bf16.msra.mxu0 %v810
        %894 = vmatprep.subr.bf16.mxu0 0
        %895 = vmatpush1.bf16.msra.mxu0 %v813
        %896 = vmatprep.subr.bf16.mxu0 0
        %897 = vmatpush1.bf16.msra.mxu0 %v816
        %898 = vmatprep.subr.bf16.mxu0 0
        %899 = vmatpush1.bf16.msra.mxu0 0
        %900 = vmatprep.subr.bf16.mxu0 0
        %901 = vmatpush1.bf16.msra.mxu0 0
        %902 = vmatprep.subr.bf16.mxu0 0
        %903 = vmatpush1.bf16.msra.mxu0 0
        %904 = vmatprep.subr.bf16.mxu0 0
        %905 = vmatpush1.bf16.msra.mxu0 0
        %906 = vmatprep.subr.bf16.mxu0 0
        %907 = vmatpush1.bf16.msra.mxu0 0
        %908 = vmatprep.subr.bf16.mxu0 0
        %909 = vmatpush1.bf16.msra.mxu0 0
        %910 = vmatprep.subr.bf16.mxu0 0
        %911 = vmatpush1.bf16.msra.mxu0 0
        %912 = vmatprep.subr.bf16.mxu0 0
        %913 = vmatpush1.bf16.msra.mxu0 0
        %914 = vmatprep.mubr.bf16.mxu0 0
        %915 = vmatmul.mubr.bf16.gmra.mrb[0].mxu0 %v662
        %v916 = vpop.f32.mrb[0].mxu0
        %v917 = vadd.f32 0.0, %v916
        %v918 = vpop.f32.mrb[0].mxu0
        %v919 = vpop.f32.mrb[0].mxu0
        %v920 = vpop.f32.mrb[0].mxu0
        %921 = vdwg.mxu0
        %v922 = vpack.c.bf16 %v876, %v876
        %v923 = vpack.c.bf16 %v878, %v878
        %924 = vmatprep.subr.bf16.mxu0 0
        %925 = vmatpush1.bf16.xpose.msra.mxu0 %v923
        %926 = vmatprep.subr.bf16.mxu0 0
        %927 = vmatpush1.bf16.xpose.msra.mxu0 0
        %928 = vmatprep.subr.bf16.mxu0 0
        %929 = vmatpush1.bf16.xpose.msra.mxu0 0
        %930 = vmatprep.subr.bf16.mxu0 0
        %931 = vmatpush1.bf16.xpose.msra.mxu0 0
        %932 = vmatprep.subr.bf16.mxu0 0
        %933 = vmatpush1.bf16.xpose.msra.mxu0 0
        %934 = vmatprep.subr.bf16.mxu0 0
        %935 = vmatpush1.bf16.xpose.msra.mxu0 0
        %936 = vmatprep.subr.bf16.mxu0 0
        %937 = vmatpush1.bf16.xpose.msra.mxu0 0
        %938 = vmatprep.subr.bf16.mxu0 0
        %939 = vmatpush1.bf16.xpose.msra.mxu0 0
        %940 = vmatprep.subr.bf16.mxu0 0
        %941 = vmatpush1.bf16.xpose.msra.mxu0 0
        %942 = vmatprep.subr.bf16.mxu0 0
        %943 = vmatpush1.bf16.xpose.msra.mxu0 0
        %944 = vmatprep.subr.bf16.mxu0 0
        %945 = vmatpush1.bf16.xpose.msra.mxu0 0
        %946 = vmatprep.subr.bf16.mxu0 0
        %947 = vmatpush1.bf16.xpose.msra.mxu0 0
        %948 = vmatprep.subr.bf16.mxu0 0
        %949 = vmatpush1.bf16.xpose.msra.mxu0 0
        %950 = vmatprep.subr.bf16.mxu0 0
        %951 = vmatpush1.bf16.xpose.msra.mxu0 0
        %952 = vmatprep.subr.bf16.mxu0 0
        %953 = vmatpush1.bf16.xpose.msra.mxu0 0
        %954 = vmatprep.subr.bf16.mxu0 0
        %955 = vmatpush1.bf16.xpose.msra.mxu0 0
        %956 = vmatprep.mubr.bf16.mxu0 0
        %957 = vmatmul.mubr.bf16.gmra.mrb[0].mxu0 %v922
        %v958 = vpop.f32.mrb[0].mxu0
        %v959 = vadd.f32 0.0, %v958
        %v960 = vpop.f32.mrb[0].mxu0
        %v961 = vpop.f32.mrb[0].mxu0
        %v962 = vpop.f32.mrb[0].mxu0
        %963 = vdwg.mxu0
        %v964 = vmul.f32 %v959, 0.088388346
        %v965 = vadd.f32 %v964, %v677
        %vm966 = vcmask 64512
        %v967 = vsel %vm966, %v965, -inf
        %968 = vmax.xlane.f32.xlu0 %v967
        %v969 = vpop.xlane.xlu0 %968
        %v970 = vsub.f32 %v965, %v969
        %v971 = vmul.f32 %v970, 1.442695
        %v972 = vpow.pop %v971
        %v973 = vsel %vm966, %v972, 0.0
        %974 = vadd.xlane.f32.xlu0 %v973
        %v975 = vpop.xlane.xlu0 %974
        %v976 = vrcp.pop %v975
        %v977 = vmul.f32 %v972, %v976
        %v978 = vpack.c.bf16 %v977, %v977
        %v979 = vpack.c.bf16 %v917, %v917
        %v981 = vsel %vm966, %v978, 0
        %vm983 = vcmask 1043456
        %v985 = vsel %vm983, %v979, 0
        %987 = vmatprep.subr.bf16.mxu0 0
        %988 = vmatpush1.bf16.msra.mxu0 %v985
        %989 = vmatprep.subr.bf16.mxu0 0
        %990 = vmatpush1.bf16.msra.mxu0 0
        %991 = vmatprep.subr.bf16.mxu0 0
        %992 = vmatpush1.bf16.msra.mxu0 0
        %993 = vmatprep.subr.bf16.mxu0 0
        %994 = vmatpush1.bf16.msra.mxu0 0
        %995 = vmatprep.subr.bf16.mxu0 0
        %996 = vmatpush1.bf16.msra.mxu0 0
        %997 = vmatprep.subr.bf16.mxu0 0
        %998 = vmatpush1.bf16.msra.mxu0 0
        %999 = vmatprep.subr.bf16.mxu0 0
        %1000 = vmatpush1.bf16.msra.mxu0 0
        %1001 = vmatprep.subr.bf16.mxu0 0
        %1002 = vmatpush1.bf16.msra.mxu0 0
        %1003 = vmatprep.subr.bf16.mxu0 0
        %1004 = vmatpush1.bf16.msra.mxu0 0
        %1005 = vmatprep.subr.bf16.mxu0 0
        %1006 = vmatpush1.bf16.msra.mxu0 0
        %1007 = vmatprep.subr.bf16.mxu0 0
        %1008 = vmatpush1.bf16.msra.mxu0 0
        %1009 = vmatprep.subr.bf16.mxu0 0
        %1010 = vmatpush1.bf16.msra.mxu0 0
        %1011 = vmatprep.subr.bf16.mxu0 0
        %1012 = vmatpush1.bf16.msra.mxu0 0
        %1013 = vmatprep.subr.bf16.mxu0 0
        %1014 = vmatpush1.bf16.msra.mxu0 0
        %1015 = vmatprep.subr.bf16.mxu0 0
        %1016 = vmatpush1.bf16.msra.mxu0 0
        %1017 = vmatprep.subr.bf16.mxu0 0
        %1018 = vmatpush1.bf16.msra.mxu0 0
        %1019 = vmatprep.mubr.bf16.mxu0 0
        %1020 = vmatmul.mubr.bf16.gmra.mrb[0].mxu0 %v981
        %v1021 = vpop.f32.mrb[0].mxu0
        %v1022 = vadd.f32 0.0, %v1021
        %v1023 = vpop.f32.mrb[0].mxu0
        %v1024 = vpop.f32.mrb[0].mxu0
        %v1025 = vpop.f32.mrb[0].mxu0
        %1026 = vdwg.mxu0
        %v1027 = vpack.c.bf16 %v1022, %v1022
        %v1028 = vld [vmem:[%s6] sm:$0xf]
        %v1029 = vld [vmem:[%s6 + $0x4] sm:$0xf]
        %v1030 = vld [vmem:[%s6 + $0x8] sm:$0xf]
        %v1031 = vld [vmem:[%s6 + $0xc] sm:$0xf]
        %v1032 = vld [vmem:[%s6 + $0x10] sm:$0xf]
        %v1033 = vld [vmem:[%s6 + $0x14] sm:$0xf]
        %v1034 = vld [vmem:[%s6 + $0x18] sm:$0xf]
        %v1035 = vld [vmem:[%s6 + $0x1c] sm:$0xf]
        %v1036 = vld [vmem:[%s6 + $0x20] sm:$0xf]
        %v1037 = vld [vmem:[%s6 + $0x24] sm:$0xf]
        %v1038 = vld [vmem:[%s6 + $0x28] sm:$0xf]
        %v1039 = vld [vmem:[%s6 + $0x2c] sm:$0xf]
        %v1040 = vld [vmem:[%s6 + $0x30] sm:$0xf]
        %v1041 = vld [vmem:[%s6 + $0x34] sm:$0xf]
        %v1042 = vld [vmem:[%s6 + $0x38] sm:$0xf]
        %v1043 = vld [vmem:[%s6 + $0x3c] sm:$0xf]
        %v1060 = vunpack.c.l.b16 %v1028
        %v1061 = vunpack.c.l.b16 %v1029
        %v1062 = vunpack.c.l.b16 %v1030
        %v1063 = vunpack.c.l.b16 %v1031
        %v1064 = vunpack.c.l.b16 %v1032
        %v1065 = vunpack.c.l.b16 %v1033
        %v1066 = vunpack.c.l.b16 %v1034
        %v1067 = vunpack.c.l.b16 %v1035
        %v1068 = vunpack.c.l.b16 %v1036
        %v1069 = vunpack.c.l.b16 %v1037
        %v1070 = vunpack.c.l.b16 %v1038
        %v1071 = vunpack.c.l.b16 %v1039
        %v1072 = vunpack.c.l.b16 %v1040
        %v1073 = vunpack.c.l.b16 %v1041
        %v1074 = vunpack.c.l.b16 %v1042
        %v1075 = vunpack.c.l.b16 %v1043
        %v1076 = vpack.c.b16 %v1061, %v1060
        %v1077 = vpack.c.b16 %v1063, %v1062
        %v1078 = vpack.c.b16 %v1065, %v1064
        %v1079 = vpack.c.b16 %v1067, %v1066
        %v1080 = vpack.c.b16 %v1069, %v1068
        %v1081 = vpack.c.b16 %v1071, %v1070
        %v1082 = vpack.c.b16 %v1073, %v1072
        %v1083 = vpack.c.b16 %v1075, %v1074
        %1092 = vmatprep.subr.bf16.mxu0 0
        %1093 = vmatpush1.bf16.msra.mxu0 %v1076
        %1094 = vmatprep.subr.bf16.mxu0 0
        %1095 = vmatpush1.bf16.msra.mxu0 %v1077
        %1096 = vmatprep.subr.bf16.mxu0 0
        %1097 = vmatpush1.bf16.msra.mxu0 %v1078
        %1098 = vmatprep.subr.bf16.mxu0 0
        %1099 = vmatpush1.bf16.msra.mxu0 %v1079
        %1100 = vmatprep.subr.bf16.mxu0 0
        %1101 = vmatpush1.bf16.msra.mxu0 %v1080
        %1102 = vmatprep.subr.bf16.mxu0 0
        %1103 = vmatpush1.bf16.msra.mxu0 %v1081
        %1104 = vmatprep.subr.bf16.mxu0 0
        %1105 = vmatpush1.bf16.msra.mxu0 %v1082
        %1106 = vmatprep.subr.bf16.mxu0 0
        %1107 = vmatpush1.bf16.msra.mxu0 %v1083
        %1108 = vmatprep.subr.bf16.mxu0 0
        %1109 = vmatpush1.bf16.msra.mxu0 0
        %1110 = vmatprep.subr.bf16.mxu0 0
        %1111 = vmatpush1.bf16.msra.mxu0 0
        %1112 = vmatprep.subr.bf16.mxu0 0
        %1113 = vmatpush1.bf16.msra.mxu0 0
        %1114 = vmatprep.subr.bf16.mxu0 0
        %1115 = vmatpush1.bf16.msra.mxu0 0
        %1116 = vmatprep.subr.bf16.mxu0 0
        %1117 = vmatpush1.bf16.msra.mxu0 0
        %1118 = vmatprep.subr.bf16.mxu0 0
        %1119 = vmatpush1.bf16.msra.mxu0 0
        %1120 = vmatprep.subr.bf16.mxu0 0
        %1121 = vmatpush1.bf16.msra.mxu0 0
        %1122 = vmatprep.subr.bf16.mxu0 0
        %1123 = vmatpush1.bf16.msra.mxu0 0
        %1124 = vmatprep.mubr.bf16.mxu0 0
        %1125 = vmatmul.mubr.bf16.gmra.mrb[0].mxu0 %v1027
        %v1126 = vpop.f32.mrb[0].mxu0
        %v1127 = vadd.f32 0.0, %v1126
        %v1128 = vpop.f32.mrb[0].mxu0
        %v1129 = vpop.f32.mrb[0].mxu0
        %v1130 = vpop.f32.mrb[0].mxu0
        %1131 = vdwg.mxu0
        %v1132 = vadd.f32 %v661, %v1127
        %1133 = vadd.xlane.f32.xlu0 %v1132
        %v1134 = vpop.xlane.xlu0 %1133
        %v1135 = vrcp.pop 128.0
        %v1136 = vmul.f32 %v1134, %v1135
        %v1137 = vsub.f32 %v1132, %v1136
        %v1138 = vmul.f32 %v1137, %v1137
        %1139 = vadd.xlane.f32.xlu0 %v1138
        %v1140 = vpop.xlane.xlu0 %1139
        %v1141 = vmul.f32 %v1140, %v1135
        %v1142 = vadd.f32 %v1141, 1e-05
        %v1143 = vrsqrt.pop %v1142
        %v1144 = vmul.f32 %v1137, %v1143
        %v1145 = vlaneseq
        %v1146 = vshrl.u32 %v1145, 7
        %v1147 = vsub.s32 3, %v1146
        %v1148 = vrot.slane %v539, %v1147
        %v1149 = vmul.f32 %v1144, %v1148
        %v1150 = vlaneseq
        %v1151 = vshrl.u32 %v1150, 7
        %v1152 = vsub.s32 4, %v1151
        %v1153 = vrot.slane %v539, %v1152
        %v1154 = vadd.f32 %v1149, %v1153
        %v1155 = vpack.c.bf16 %v1154, %v1154
        %v1156 = vld [vmem:[%s7] sm:$0xf]
        %v1157 = vld [vmem:[%s7 + $0x4] sm:$0xf]
        %v1158 = vld [vmem:[%s7 + $0x8] sm:$0xf]
        %v1159 = vld [vmem:[%s7 + $0xc] sm:$0xf]
        %v1160 = vld [vmem:[%s7 + $0x10] sm:$0xf]
        %v1161 = vld [vmem:[%s7 + $0x14] sm:$0xf]
        %v1162 = vld [vmem:[%s7 + $0x18] sm:$0xf]
        %v1163 = vld [vmem:[%s7 + $0x1c] sm:$0xf]
        %v1164 = vld [vmem:[%s7 + $0x20] sm:$0xf]
        %v1165 = vld [vmem:[%s7 + $0x24] sm:$0xf]
        %v1166 = vld [vmem:[%s7 + $0x28] sm:$0xf]
        %v1167 = vld [vmem:[%s7 + $0x2c] sm:$0xf]
        %v1168 = vld [vmem:[%s7 + $0x30] sm:$0xf]
        %v1169 = vld [vmem:[%s7 + $0x34] sm:$0xf]
        %v1170 = vld [vmem:[%s7 + $0x38] sm:$0xf]
        %v1171 = vld [vmem:[%s7 + $0x3c] sm:$0xf]
        %v1188 = vunpack.c.l.b16 %v1156
        %v1189 = vunpack.c.l.b16 %v1157
        %v1190 = vunpack.c.l.b16 %v1158
        %v1191 = vunpack.c.l.b16 %v1159
        %v1192 = vunpack.c.l.b16 %v1160
        %v1193 = vunpack.c.l.b16 %v1161
        %v1194 = vunpack.c.l.b16 %v1162
        %v1195 = vunpack.c.l.b16 %v1163
        %v1196 = vunpack.c.l.b16 %v1164
        %v1197 = vunpack.c.l.b16 %v1165
        %v1198 = vunpack.c.l.b16 %v1166
        %v1199 = vunpack.c.l.b16 %v1167
        %v1200 = vunpack.c.l.b16 %v1168
        %v1201 = vunpack.c.l.b16 %v1169
        %v1202 = vunpack.c.l.b16 %v1170
        %v1203 = vunpack.c.l.b16 %v1171
        %v1204 = vpack.c.b16 %v1189, %v1188
        %v1205 = vpack.c.b16 %v1191, %v1190
        %v1206 = vpack.c.b16 %v1193, %v1192
        %v1207 = vpack.c.b16 %v1195, %v1194
        %v1208 = vpack.c.b16 %v1197, %v1196
        %v1209 = vpack.c.b16 %v1199, %v1198
        %v1210 = vpack.c.b16 %v1201, %v1200
        %v1211 = vpack.c.b16 %v1203, %v1202
        %1220 = vmatprep.subr.bf16.mxu0 0
        %1221 = vmatpush1.bf16.msra.mxu0 %v1204
        %1222 = vmatprep.subr.bf16.mxu0 0
        %1223 = vmatpush1.bf16.msra.mxu0 %v1205
        %1224 = vmatprep.subr.bf16.mxu0 0
        %1225 = vmatpush1.bf16.msra.mxu0 %v1206
        %1226 = vmatprep.subr.bf16.mxu0 0
        %1227 = vmatpush1.bf16.msra.mxu0 %v1207
        %1228 = vmatprep.subr.bf16.mxu0 0
        %1229 = vmatpush1.bf16.msra.mxu0 %v1208
        %1230 = vmatprep.subr.bf16.mxu0 0
        %1231 = vmatpush1.bf16.msra.mxu0 %v1209
        %1232 = vmatprep.subr.bf16.mxu0 0
        %1233 = vmatpush1.bf16.msra.mxu0 %v1210
        %1234 = vmatprep.subr.bf16.mxu0 0
        %1235 = vmatpush1.bf16.msra.mxu0 %v1211
        %1236 = vmatprep.subr.bf16.mxu0 0
        %1237 = vmatpush1.bf16.msra.mxu0 0
        %1238 = vmatprep.subr.bf16.mxu0 0
        %1239 = vmatpush1.bf16.msra.mxu0 0
        %1240 = vmatprep.subr.bf16.mxu0 0
        %1241 = vmatpush1.bf16.msra.mxu0 0
        %1242 = vmatprep.subr.bf16.mxu0 0
        %1243 = vmatpush1.bf16.msra.mxu0 0
        %1244 = vmatprep.subr.bf16.mxu0 0
        %1245 = vmatpush1.bf16.msra.mxu0 0
        %1246 = vmatprep.subr.bf16.mxu0 0
        %1247 = vmatpush1.bf16.msra.mxu0 0
        %1248 = vmatprep.subr.bf16.mxu0 0
        %1249 = vmatpush1.bf16.msra.mxu0 0
        %1250 = vmatprep.subr.bf16.mxu0 0
        %1251 = vmatpush1.bf16.msra.mxu0 0
        %1252 = vmatprep.mubr.bf16.mxu0 0
        %1253 = vmatmul.mubr.bf16.gmra.mrb[0].mxu0 %v1155
        %v1254 = vpop.f32.mrb[0].mxu0
        %v1255 = vadd.f32 0.0, %v1254
        %v1256 = vpop.f32.mrb[0].mxu0
        %v1257 = vpop.f32.mrb[0].mxu0
        %v1258 = vpop.f32.mrb[0].mxu0
        %1259 = vdwg.mxu0
        %v1260 = vld [vmem:[%s8] sm:$0xff]
        %v1261 = vld [vmem:[%s8 + $0x8] sm:$0xff]
        %v1262 = vld [vmem:[%s8 + $0x10] sm:$0xff]
        %v1263 = vld [vmem:[%s8 + $0x18] sm:$0xff]
        %v1264 = vld [vmem:[%s8 + $0x20] sm:$0xff]
        %v1265 = vld [vmem:[%s8 + $0x28] sm:$0xff]
        %v1266 = vld [vmem:[%s8 + $0x30] sm:$0xff]
        %v1267 = vld [vmem:[%s8 + $0x38] sm:$0xff]
        %v1268 = vld [vmem:[%s8 + $0x40] sm:$0xff]
        %v1269 = vld [vmem:[%s8 + $0x48] sm:$0xff]
        %v1270 = vld [vmem:[%s8 + $0x50] sm:$0xff]
        %v1271 = vld [vmem:[%s8 + $0x58] sm:$0xff]
        %v1272 = vld [vmem:[%s8 + $0x60] sm:$0xff]
        %v1273 = vld [vmem:[%s8 + $0x68] sm:$0xff]
        %v1274 = vld [vmem:[%s8 + $0x70] sm:$0xff]
        %v1275 = vld [vmem:[%s8 + $0x78] sm:$0xff]
        %v1292 = vunpack.c.l.b16 %v1260
        %v1293 = vunpack.c.h.b16 %v1260
        %v1294 = vunpack.c.l.b16 %v1261
        %v1295 = vunpack.c.h.b16 %v1261
        %v1296 = vunpack.c.l.b16 %v1262
        %v1297 = vunpack.c.h.b16 %v1262
        %v1298 = vunpack.c.l.b16 %v1263
        %v1299 = vunpack.c.h.b16 %v1263
        %v1300 = vunpack.c.l.b16 %v1264
        %v1301 = vunpack.c.h.b16 %v1264
        %v1302 = vunpack.c.l.b16 %v1265
        %v1303 = vunpack.c.h.b16 %v1265
        %v1304 = vunpack.c.l.b16 %v1266
        %v1305 = vunpack.c.h.b16 %v1266
        %v1306 = vunpack.c.l.b16 %v1267
        %v1307 = vunpack.c.h.b16 %v1267
        %v1308 = vunpack.c.l.b16 %v1268
        %v1309 = vunpack.c.h.b16 %v1268
        %v1310 = vunpack.c.l.b16 %v1269
        %v1311 = vunpack.c.h.b16 %v1269
        %v1312 = vunpack.c.l.b16 %v1270
        %v1313 = vunpack.c.h.b16 %v1270
        %v1314 = vunpack.c.l.b16 %v1271
        %v1315 = vunpack.c.h.b16 %v1271
        %v1316 = vunpack.c.l.b16 %v1272
        %v1317 = vunpack.c.h.b16 %v1272
        %v1318 = vunpack.c.l.b16 %v1273
        %v1319 = vunpack.c.h.b16 %v1273
        %v1320 = vunpack.c.l.b16 %v1274
        %v1321 = vunpack.c.h.b16 %v1274
        %v1322 = vunpack.c.l.b16 %v1275
        %v1323 = vunpack.c.h.b16 %v1275
        %v1324 = vpack.c.b16 %v1294, %v1292
        %v1325 = vpack.c.b16 %v1295, %v1293
        %v1326 = vpack.c.b16 %v1298, %v1296
        %v1327 = vpack.c.b16 %v1299, %v1297
        %v1328 = vpack.c.b16 %v1302, %v1300
        %v1329 = vpack.c.b16 %v1303, %v1301
        %v1330 = vpack.c.b16 %v1306, %v1304
        %v1331 = vpack.c.b16 %v1307, %v1305
        %v1332 = vpack.c.b16 %v1310, %v1308
        %v1333 = vpack.c.b16 %v1311, %v1309
        %v1334 = vpack.c.b16 %v1314, %v1312
        %v1335 = vpack.c.b16 %v1315, %v1313
        %v1336 = vpack.c.b16 %v1318, %v1316
        %v1337 = vpack.c.b16 %v1319, %v1317
        %v1338 = vpack.c.b16 %v1322, %v1320
        %v1339 = vpack.c.b16 %v1323, %v1321
        %1356 = vmatprep.subr.bf16.mxu0 %v1325
        %1357 = vmatpush1.bf16.msra.mxu0 %v1324
        %1358 = vmatprep.subr.bf16.mxu0 %v1327
        %1359 = vmatpush1.bf16.msra.mxu0 %v1326
        %1360 = vmatprep.subr.bf16.mxu0 %v1329
        %1361 = vmatpush1.bf16.msra.mxu0 %v1328
        %1362 = vmatprep.subr.bf16.mxu0 %v1331
        %1363 = vmatpush1.bf16.msra.mxu0 %v1330
        %1364 = vmatprep.subr.bf16.mxu0 %v1333
        %1365 = vmatpush1.bf16.msra.mxu0 %v1332
        %1366 = vmatprep.subr.bf16.mxu0 %v1335
        %1367 = vmatpush1.bf16.msra.mxu0 %v1334
        %1368 = vmatprep.subr.bf16.mxu0 %v1337
        %1369 = vmatpush1.bf16.msra.mxu0 %v1336
        %1370 = vmatprep.subr.bf16.mxu0 %v1339
        %1371 = vmatpush1.bf16.msra.mxu0 %v1338
        %1372 = vmatprep.subr.bf16.mxu0 0
        %1373 = vmatpush1.bf16.msra.mxu0 0
        %1374 = vmatprep.subr.bf16.mxu0 0
        %1375 = vmatpush1.bf16.msra.mxu0 0
        %1376 = vmatprep.subr.bf16.mxu0 0
        %1377 = vmatpush1.bf16.msra.mxu0 0
        %1378 = vmatprep.subr.bf16.mxu0 0
        %1379 = vmatpush1.bf16.msra.mxu0 0
        %1380 = vmatprep.subr.bf16.mxu0 0
        %1381 = vmatpush1.bf16.msra.mxu0 0
        %1382 = vmatprep.subr.bf16.mxu0 0
        %1383 = vmatpush1.bf16.msra.mxu0 0
        %1384 = vmatprep.subr.bf16.mxu0 0
        %1385 = vmatpush1.bf16.msra.mxu0 0
        %1386 = vmatprep.subr.bf16.mxu0 0
        %1387 = vmatpush1.bf16.msra.mxu0 0
        %1388 = vmatprep.mubr.bf16.mxu0 0
        %1389 = vmatmul.mubr.bf16.gmra.mrb[0].mxu0 %v660
        %v1390 = vpop.f32.mrb[0].mxu0
        %v1391 = vadd.f32 0.0, %v1390
        %v1392 = vpop.f32.mrb[0].mxu0
        %v1393 = vadd.f32 0.0, %v1392
        %v1394 = vpop.f32.mrb[0].mxu0
        %v1395 = vadd.f32 0.0, %v1394
        %v1396 = vpop.f32.mrb[0].mxu0
        %v1397 = vadd.f32 0.0, %v1396
        %1398 = vdwg.mxu0
        %v1399 = vpack.c.bf16 %v1255, %v1255
        %v1400 = vpack.c.bf16 %v1395, %v1391
        %1401 = vmatprep.subr.bf16.mxu0 0
        %1402 = vmatpush1.bf16.xpose.msra.mxu0 %v1400
        %1403 = vmatprep.subr.bf16.mxu0 0
        %1404 = vmatpush1.bf16.xpose.msra.mxu0 0
        %1405 = vmatprep.subr.bf16.mxu0 0
        %1406 = vmatpush1.bf16.xpose.msra.mxu0 0
        %1407 = vmatprep.subr.bf16.mxu0 0
        %1408 = vmatpush1.bf16.xpose.msra.mxu0 0
        %1409 = vmatprep.subr.bf16.mxu0 0
        %1410 = vmatpush1.bf16.xpose.msra.mxu0 0
        %1411 = vmatprep.subr.bf16.mxu0 0
        %1412 = vmatpush1.bf16.xpose.msra.mxu0 0
        %1413 = vmatprep.subr.bf16.mxu0 0
        %1414 = vmatpush1.bf16.xpose.msra.mxu0 0
        %1415 = vmatprep.subr.bf16.mxu0 0
        %1416 = vmatpush1.bf16.xpose.msra.mxu0 0
        %1417 = vmatprep.subr.bf16.mxu0 0
        %1418 = vmatpush1.bf16.xpose.msra.mxu0 0
        %1419 = vmatprep.subr.bf16.mxu0 0
        %1420 = vmatpush1.bf16.xpose.msra.mxu0 0
        %1421 = vmatprep.subr.bf16.mxu0 0
        %1422 = vmatpush1.bf16.xpose.msra.mxu0 0
        %1423 = vmatprep.subr.bf16.mxu0 0
        %1424 = vmatpush1.bf16.xpose.msra.mxu0 0
        %1425 = vmatprep.subr.bf16.mxu0 0
        %1426 = vmatpush1.bf16.xpose.msra.mxu0 0
        %1427 = vmatprep.subr.bf16.mxu0 0
        %1428 = vmatpush1.bf16.xpose.msra.mxu0 0
        %1429 = vmatprep.subr.bf16.mxu0 0
        %1430 = vmatpush1.bf16.xpose.msra.mxu0 0
        %1431 = vmatprep.subr.bf16.mxu0 0
        %1432 = vmatpush1.bf16.xpose.msra.mxu0 0
        %1433 = vmatprep.mubr.bf16.mxu0 0
        %1434 = vmatmul.mubr.bf16.gmra.mrb[0].mxu0 %v1399
        %v1435 = vpop.f32.mrb[0].mxu0
        %v1436 = vadd.f32 0.0, %v1435
        %v1437 = vpop.f32.mrb[0].mxu0
        %v1438 = vpop.f32.mrb[0].mxu0
        %v1439 = vpop.f32.mrb[0].mxu0
        %1440 = vdwg.mxu0
        %v1441 = vmul.f32 %v1436, 0.088388346
        %v1443 = vlaneseq
        %v1444 = vshrl.u32 %v1443, 7
        %v1445 = vsub.s32 0, %v1444
        %v1446 = vrot.slane %v680, %v1445
        %v1448 = vadd.f32 %v1441, %v1446
        %vm1449 = vcmask 130048
        %v1450 = vsel %vm1449, %v1448, -inf
        %1451 = vmax.xlane.f32.xlu0 %v1450
        %v1452 = vpop.xlane.xlu0 %1451
        %v1453 = vsub.f32 %v1448, %v1452
        %v1454 = vmul.f32 %v1453, 1.442695
        %v1455 = vpow.pop %v1454
        %v1456 = vsel %vm1449, %v1455, 0.0
        %1457 = vadd.xlane.f32.xlu0 %v1456
        %v1458 = vpop.xlane.xlu0 %1457
        %v1459 = vrcp.pop %v1458
        %v1460 = vmul.f32 %v1455, %v1459
        %v1461 = vpack.c.bf16 %v1460, %v1460
        %v1462 = vpack.c.bf16 %v1397, %v1393
        %v1464 = vsel %vm1449, %v1461, 0
        %1466 = vmatprep.subr.bf16.mxu0 0
        %1467 = vmatpush1.bf16.msra.mxu0 %v1462
        %1468 = vmatprep.subr.bf16.mxu0 0
        %1469 = vmatpush1.bf16.msra.mxu0 0
        %1470 = vmatprep.subr.bf16.mxu0 0
        %1471 = vmatpush1.bf16.msra.mxu0 0
        %1472 = vmatprep.subr.bf16.mxu0 0
        %1473 = vmatpush1.bf16.msra.mxu0 0
        %1474 = vmatprep.subr.bf16.mxu0 0
        %1475 = vmatpush1.bf16.msra.mxu0 0
        %1476 = vmatprep.subr.bf16.mxu0 0
        %1477 = vmatpush1.bf16.msra.mxu0 0
        %1478 = vmatprep.subr.bf16.mxu0 0
        %1479 = vmatpush1.bf16.msra.mxu0 0
        %1480 = vmatprep.subr.bf16.mxu0 0
        %1481 = vmatpush1.bf16.msra.mxu0 0
        %1482 = vmatprep.subr.bf16.mxu0 0
        %1483 = vmatpush1.bf16.msra.mxu0 0
        %1484 = vmatprep.subr.bf16.mxu0 0
        %1485 = vmatpush1.bf16.msra.mxu0 0
        %1486 = vmatprep.subr.bf16.mxu0 0
        %1487 = vmatpush1.bf16.msra.mxu0 0
        %1488 = vmatprep.subr.bf16.mxu0 0
        %1489 = vmatpush1.bf16.msra.mxu0 0
        %1490 = vmatprep.subr.bf16.mxu0 0
        %1491 = vmatpush1.bf16.msra.mxu0 0
        %1492 = vmatprep.subr.bf16.mxu0 0
        %1493 = vmatpush1.bf16.msra.mxu0 0
        %1494 = vmatprep.subr.bf16.mxu0 0
        %1495 = vmatpush1.bf16.msra.mxu0 0
        %1496 = vmatprep.subr.bf16.mxu0 0
        %1497 = vmatpush1.bf16.msra.mxu0 0
        %1498 = vmatprep.mubr.bf16.mxu0 0
        %1499 = vmatmul.mubr.bf16.gmra.mrb[0].mxu0 %v1464
        %v1500 = vpop.f32.mrb[0].mxu0
        %v1501 = vadd.f32 0.0, %v1500
        %v1502 = vpop.f32.mrb[0].mxu0
        %v1503 = vpop.f32.mrb[0].mxu0
        %v1504 = vpop.f32.mrb[0].mxu0
        %1505 = vdwg.mxu0
        %v1506 = vpack.c.bf16 %v1501, %v1501
        %v1507 = vld [vmem:[%s9] sm:$0xf]
        %v1508 = vld [vmem:[%s9 + $0x4] sm:$0xf]
        %v1509 = vld [vmem:[%s9 + $0x8] sm:$0xf]
        %v1510 = vld [vmem:[%s9 + $0xc] sm:$0xf]
        %v1511 = vld [vmem:[%s9 + $0x10] sm:$0xf]
        %v1512 = vld [vmem:[%s9 + $0x14] sm:$0xf]
        %v1513 = vld [vmem:[%s9 + $0x18] sm:$0xf]
        %v1514 = vld [vmem:[%s9 + $0x1c] sm:$0xf]
        %v1515 = vld [vmem:[%s9 + $0x20] sm:$0xf]
        %v1516 = vld [vmem:[%s9 + $0x24] sm:$0xf]
        %v1517 = vld [vmem:[%s9 + $0x28] sm:$0xf]
        %v1518 = vld [vmem:[%s9 + $0x2c] sm:$0xf]
        %v1519 = vld [vmem:[%s9 + $0x30] sm:$0xf]
        %v1520 = vld [vmem:[%s9 + $0x34] sm:$0xf]
        %v1521 = vld [vmem:[%s9 + $0x38] sm:$0xf]
        %v1522 = vld [vmem:[%s9 + $0x3c] sm:$0xf]
        %v1539 = vunpack.c.l.b16 %v1507
        %v1540 = vunpack.c.l.b16 %v1508
        %v1541 = vunpack.c.l.b16 %v1509
        %v1542 = vunpack.c.l.b16 %v1510
        %v1543 = vunpack.c.l.b16 %v1511
        %v1544 = vunpack.c.l.b16 %v1512
        %v1545 = vunpack.c.l.b16 %v1513
        %v1546 = vunpack.c.l.b16 %v1514
        %v1547 = vunpack.c.l.b16 %v1515
        %v1548 = vunpack.c.l.b16 %v1516
        %v1549 = vunpack.c.l.b16 %v1517
        %v1550 = vunpack.c.l.b16 %v1518
        %v1551 = vunpack.c.l.b16 %v1519
        %v1552 = vunpack.c.l.b16 %v1520
        %v1553 = vunpack.c.l.b16 %v1521
        %v1554 = vunpack.c.l.b16 %v1522
        %v1555 = vpack.c.b16 %v1540, %v1539
        %v1556 = vpack.c.b16 %v1542, %v1541
        %v1557 = vpack.c.b16 %v1544, %v1543
        %v1558 = vpack.c.b16 %v1546, %v1545
        %v1559 = vpack.c.b16 %v1548, %v1547
        %v1560 = vpack.c.b16 %v1550, %v1549
        %v1561 = vpack.c.b16 %v1552, %v1551
        %v1562 = vpack.c.b16 %v1554, %v1553
        %1571 = vmatprep.subr.bf16.mxu0 0
        %1572 = vmatpush1.bf16.msra.mxu0 %v1555
        %1573 = vmatprep.subr.bf16.mxu0 0
        %1574 = vmatpush1.bf16.msra.mxu0 %v1556
        %1575 = vmatprep.subr.bf16.mxu0 0
        %1576 = vmatpush1.bf16.msra.mxu0 %v1557
        %1577 = vmatprep.subr.bf16.mxu0 0
        %1578 = vmatpush1.bf16.msra.mxu0 %v1558
        %1579 = vmatprep.subr.bf16.mxu0 0
        %1580 = vmatpush1.bf16.msra.mxu0 %v1559
        %1581 = vmatprep.subr.bf16.mxu0 0
        %1582 = vmatpush1.bf16.msra.mxu0 %v1560
        %1583 = vmatprep.subr.bf16.mxu0 0
        %1584 = vmatpush1.bf16.msra.mxu0 %v1561
        %1585 = vmatprep.subr.bf16.mxu0 0
        %1586 = vmatpush1.bf16.msra.mxu0 %v1562
        %1587 = vmatprep.subr.bf16.mxu0 0
        %1588 = vmatpush1.bf16.msra.mxu0 0
        %1589 = vmatprep.subr.bf16.mxu0 0
        %1590 = vmatpush1.bf16.msra.mxu0 0
        %1591 = vmatprep.subr.bf16.mxu0 0
        %1592 = vmatpush1.bf16.msra.mxu0 0
        %1593 = vmatprep.subr.bf16.mxu0 0
        %1594 = vmatpush1.bf16.msra.mxu0 0
        %1595 = vmatprep.subr.bf16.mxu0 0
        %1596 = vmatpush1.bf16.msra.mxu0 0
        %1597 = vmatprep.subr.bf16.mxu0 0
        %1598 = vmatpush1.bf16.msra.mxu0 0
        %1599 = vmatprep.subr.bf16.mxu0 0
        %1600 = vmatpush1.bf16.msra.mxu0 0
        %1601 = vmatprep.subr.bf16.mxu0 0
        %1602 = vmatpush1.bf16.msra.mxu0 0
        %1603 = vmatprep.mubr.bf16.mxu0 0
        %1604 = vmatmul.mubr.bf16.gmra.mrb[0].mxu0 %v1506
        %v1605 = vpop.f32.mrb[0].mxu0
        %v1606 = vadd.f32 0.0, %v1605
        %v1607 = vpop.f32.mrb[0].mxu0
        %v1608 = vpop.f32.mrb[0].mxu0
        %v1609 = vpop.f32.mrb[0].mxu0
        %1610 = vdwg.mxu0
        %v1611 = vadd.f32 %v1154, %v1606
        %1612 = vadd.xlane.f32.xlu0 %v1611
        %v1613 = vpop.xlane.xlu0 %1612
        %v1614 = vmul.f32 %v1613, %v1135
        %v1615 = vsub.f32 %v1611, %v1614
        %v1616 = vmul.f32 %v1615, %v1615
        %1617 = vadd.xlane.f32.xlu0 %v1616
        %v1618 = vpop.xlane.xlu0 %1617
        %v1619 = vmul.f32 %v1618, %v1135
        %v1620 = vadd.f32 %v1619, 1e-05
        %v1621 = vrsqrt.pop %v1620
        %v1622 = vmul.f32 %v1615, %v1621
        %v1623 = vlaneseq
        %v1624 = vshrl.u32 %v1623, 7
        %v1625 = vsub.s32 5, %v1624
        %v1626 = vrot.slane %v539, %v1625
        %v1627 = vmul.f32 %v1622, %v1626
        %v1628 = vlaneseq
        %v1629 = vshrl.u32 %v1628, 7
        %v1630 = vsub.s32 6, %v1629
        %v1631 = vrot.slane %v539, %v1630
        %v1632 = vadd.f32 %v1627, %v1631
        %v1633 = vpack.c.bf16 %v1632, %v1632
        %v1634 = vld [vmem:[%s10] sm:$0xff]
        %v1635 = vld [vmem:[%s10 + $0x8] sm:$0xff]
        %v1636 = vld [vmem:[%s10 + $0x10] sm:$0xff]
        %v1637 = vld [vmem:[%s10 + $0x18] sm:$0xff]
        %v1638 = vld [vmem:[%s10 + $0x20] sm:$0xff]
        %v1639 = vld [vmem:[%s10 + $0x28] sm:$0xff]
        %v1640 = vld [vmem:[%s10 + $0x30] sm:$0xff]
        %v1641 = vld [vmem:[%s10 + $0x38] sm:$0xff]
        %v1642 = vld [vmem:[%s10 + $0x40] sm:$0xff]
        %v1643 = vld [vmem:[%s10 + $0x48] sm:$0xff]
        %v1644 = vld [vmem:[%s10 + $0x50] sm:$0xff]
        %v1645 = vld [vmem:[%s10 + $0x58] sm:$0xff]
        %v1646 = vld [vmem:[%s10 + $0x60] sm:$0xff]
        %v1647 = vld [vmem:[%s10 + $0x68] sm:$0xff]
        %v1648 = vld [vmem:[%s10 + $0x70] sm:$0xff]
        %v1649 = vld [vmem:[%s10 + $0x78] sm:$0xff]
        %v1650 = vld [vmem:[%s11] sm:$0x3]
        %v1652 = vlaneseq
        %v1653 = vshrl.u32 %v1652, 7
        %v1654 = vsub.s32 0, %v1653
        %v1655 = vrot.slane %v1650, %v1654
        %v1656 = vlaneseq
        %v1657 = vshrl.u32 %v1656, 7
        %v1658 = vsub.s32 1, %v1657
        %v1659 = vrot.slane %v1650, %v1658
        %v1678 = vunpack.c.l.b16 %v1634
        %v1679 = vunpack.c.h.b16 %v1634
        %v1680 = vunpack.c.l.b16 %v1635
        %v1681 = vunpack.c.h.b16 %v1635
        %v1682 = vunpack.c.l.b16 %v1636
        %v1683 = vunpack.c.h.b16 %v1636
        %v1684 = vunpack.c.l.b16 %v1637
        %v1685 = vunpack.c.h.b16 %v1637
        %v1686 = vunpack.c.l.b16 %v1638
        %v1687 = vunpack.c.h.b16 %v1638
        %v1688 = vunpack.c.l.b16 %v1639
        %v1689 = vunpack.c.h.b16 %v1639
        %v1690 = vunpack.c.l.b16 %v1640
        %v1691 = vunpack.c.h.b16 %v1640
        %v1692 = vunpack.c.l.b16 %v1641
        %v1693 = vunpack.c.h.b16 %v1641
        %v1694 = vunpack.c.l.b16 %v1642
        %v1695 = vunpack.c.h.b16 %v1642
        %v1696 = vunpack.c.l.b16 %v1643
        %v1697 = vunpack.c.h.b16 %v1643
        %v1698 = vunpack.c.l.b16 %v1644
        %v1699 = vunpack.c.h.b16 %v1644
        %v1700 = vunpack.c.l.b16 %v1645
        %v1701 = vunpack.c.h.b16 %v1645
        %v1702 = vunpack.c.l.b16 %v1646
        %v1703 = vunpack.c.h.b16 %v1646
        %v1704 = vunpack.c.l.b16 %v1647
        %v1705 = vunpack.c.h.b16 %v1647
        %v1706 = vunpack.c.l.b16 %v1648
        %v1707 = vunpack.c.h.b16 %v1648
        %v1708 = vunpack.c.l.b16 %v1649
        %v1709 = vunpack.c.h.b16 %v1649
        %v1710 = vpack.c.b16 %v1680, %v1678
        %v1711 = vpack.c.b16 %v1681, %v1679
        %v1712 = vpack.c.b16 %v1684, %v1682
        %v1713 = vpack.c.b16 %v1685, %v1683
        %v1714 = vpack.c.b16 %v1688, %v1686
        %v1715 = vpack.c.b16 %v1689, %v1687
        %v1716 = vpack.c.b16 %v1692, %v1690
        %v1717 = vpack.c.b16 %v1693, %v1691
        %v1718 = vpack.c.b16 %v1696, %v1694
        %v1719 = vpack.c.b16 %v1697, %v1695
        %v1720 = vpack.c.b16 %v1700, %v1698
        %v1721 = vpack.c.b16 %v1701, %v1699
        %v1722 = vpack.c.b16 %v1704, %v1702
        %v1723 = vpack.c.b16 %v1705, %v1703
        %v1724 = vpack.c.b16 %v1708, %v1706
        %v1725 = vpack.c.b16 %v1709, %v1707
        %1742 = vmatprep.subr.bf16.mxu0 %v1711
        %1743 = vmatpush1.bf16.msra.mxu0 %v1710
        %1744 = vmatprep.subr.bf16.mxu0 %v1713
        %1745 = vmatpush1.bf16.msra.mxu0 %v1712
        %1746 = vmatprep.subr.bf16.mxu0 %v1715
        %1747 = vmatpush1.bf16.msra.mxu0 %v1714
        %1748 = vmatprep.subr.bf16.mxu0 %v1717
        %1749 = vmatpush1.bf16.msra.mxu0 %v1716
        %1750 = vmatprep.subr.bf16.mxu0 %v1719
        %1751 = vmatpush1.bf16.msra.mxu0 %v1718
        %1752 = vmatprep.subr.bf16.mxu0 %v1721
        %1753 = vmatpush1.bf16.msra.mxu0 %v1720
        %1754 = vmatprep.subr.bf16.mxu0 %v1723
        %1755 = vmatpush1.bf16.msra.mxu0 %v1722
        %1756 = vmatprep.subr.bf16.mxu0 %v1725
        %1757 = vmatpush1.bf16.msra.mxu0 %v1724
        %1758 = vmatprep.subr.bf16.mxu0 0
        %1759 = vmatpush1.bf16.msra.mxu0 0
        %1760 = vmatprep.subr.bf16.mxu0 0
        %1761 = vmatpush1.bf16.msra.mxu0 0
        %1762 = vmatprep.subr.bf16.mxu0 0
        %1763 = vmatpush1.bf16.msra.mxu0 0
        %1764 = vmatprep.subr.bf16.mxu0 0
        %1765 = vmatpush1.bf16.msra.mxu0 0
        %1766 = vmatprep.subr.bf16.mxu0 0
        %1767 = vmatpush1.bf16.msra.mxu0 0
        %1768 = vmatprep.subr.bf16.mxu0 0
        %1769 = vmatpush1.bf16.msra.mxu0 0
        %1770 = vmatprep.subr.bf16.mxu0 0
        %1771 = vmatpush1.bf16.msra.mxu0 0
        %1772 = vmatprep.subr.bf16.mxu0 0
        %1773 = vmatpush1.bf16.msra.mxu0 0
        %1774 = vmatprep.mubr.bf16.mxu0 0
        %1775 = vmatmul.mubr.bf16.gmra.mrb[0].mxu0 %v1633
        %v1776 = vpop.f32.mrb[0].mxu0
        %v1777 = vadd.f32 %v1655, %v1776
        %v1778 = vpop.f32.mrb[0].mxu0
        %v1779 = vadd.f32 %v1659, %v1778
        %v1780 = vpop.f32.mrb[0].mxu0
        %v1781 = vpop.f32.mrb[0].mxu0
        %1782 = vdwg.mxu0
        %v1783 = vmax.f32 %v1777, 0.0
        %v1784 = vmax.f32 %v1779, 0.0
        %v1785 = vpack.c.bf16 %v1783, %v1783
        %v1786 = vpack.c.bf16 %v1784, %v1784
        %v1787 = vld [vmem:[%s12] sm:$0xf]
        %v1788 = vld [vmem:[%s12 + $0x4] sm:$0xf]
        %v1789 = vld [vmem:[%s12 + $0x8] sm:$0xf]
        %v1790 = vld [vmem:[%s12 + $0xc] sm:$0xf]
        %v1791 = vld [vmem:[%s12 + $0x10] sm:$0xf]
        %v1792 = vld [vmem:[%s12 + $0x14] sm:$0xf]
        %v1793 = vld [vmem:[%s12 + $0x18] sm:$0xf]
        %v1794 = vld [vmem:[%s12 + $0x1c] sm:$0xf]
        %v1795 = vld [vmem:[%s12 + $0x20] sm:$0xf]
        %v1796 = vld [vmem:[%s12 + $0x24] sm:$0xf]
        %v1797 = vld [vmem:[%s12 + $0x28] sm:$0xf]
        %v1798 = vld [vmem:[%s12 + $0x2c] sm:$0xf]
        %v1799 = vld [vmem:[%s12 + $0x30] sm:$0xf]
        %v1800 = vld [vmem:[%s12 + $0x34] sm:$0xf]
        %v1801 = vld [vmem:[%s12 + $0x38] sm:$0xf]
        %v1802 = vld [vmem:[%s12 + $0x3c] sm:$0xf]
        %v1803 = vld [vmem:[%s12 + $0x40] sm:$0xf]
        %v1804 = vld [vmem:[%s12 + $0x44] sm:$0xf]
        %v1805 = vld [vmem:[%s12 + $0x48] sm:$0xf]
        %v1806 = vld [vmem:[%s12 + $0x4c] sm:$0xf]
        %v1807 = vld [vmem:[%s12 + $0x50] sm:$0xf]
        %v1808 = vld [vmem:[%s12 + $0x54] sm:$0xf]
        %v1809 = vld [vmem:[%s12 + $0x58] sm:$0xf]
        %v1810 = vld [vmem:[%s12 + $0x5c] sm:$0xf]
        %v1811 = vld [vmem:[%s12 + $0x60] sm:$0xf]
        %v1812 = vld [vmem:[%s12 + $0x64] sm:$0xf]
        %v1813 = vld [vmem:[%s12 + $0x68] sm:$0xf]
        %v1814 = vld [vmem:[%s12 + $0x6c] sm:$0xf]
        %v1815 = vld [vmem:[%s12 + $0x70] sm:$0xf]
        %v1816 = vld [vmem:[%s12 + $0x74] sm:$0xf]
        %v1817 = vld [vmem:[%s12 + $0x78] sm:$0xf]
        %v1818 = vld [vmem:[%s12 + $0x7c] sm:$0xf]
        %v1819 = vlaneseq
        %v1820 = vshrl.u32 %v1819, 7
        %v1821 = vsub.s32 1, %v1820
        %v1822 = vrot.slane %v539, %v1821
        %v1855 = vunpack.c.l.b16 %v1787
        %v1856 = vunpack.c.l.b16 %v1788
        %v1857 = vunpack.c.l.b16 %v1789
        %v1858 = vunpack.c.l.b16 %v1790
        %v1859 = vunpack.c.l.b16 %v1791
        %v1860 = vunpack.c.l.b16 %v1792
        %v1861 = vunpack.c.l.b16 %v1793
        %v1862 = vunpack.c.l.b16 %v1794
        %v1863 = vunpack.c.l.b16 %v1795
        %v1864 = vunpack.c.l.b16 %v1796
        %v1865 = vunpack.c.l.b16 %v1797
        %v1866 = vunpack.c.l.b16 %v1798
        %v1867 = vunpack.c.l.b16 %v1799
        %v1868 = vunpack.c.l.b16 %v1800
        %v1869 = vunpack.c.l.b16 %v1801
        %v1870 = vunpack.c.l.b16 %v1802
        %v1871 = vunpack.c.l.b16 %v1803
        %v1872 = vunpack.c.l.b16 %v1804
        %v1873 = vunpack.c.l.b16 %v1805
        %v1874 = vunpack.c.l.b16 %v1806
        %v1875 = vunpack.c.l.b16 %v1807
        %v1876 = vunpack.c.l.b16 %v1808
        %v1877 = vunpack.c.l.b16 %v1809
        %v1878 = vunpack.c.l.b16 %v1810
        %v1879 = vunpack.c.l.b16 %v1811
        %v1880 = vunpack.c.l.b16 %v1812
        %v1881 = vunpack.c.l.b16 %v1813
        %v1882 = vunpack.c.l.b16 %v1814
        %v1883 = vunpack.c.l.b16 %v1815
        %v1884 = vunpack.c.l.b16 %v1816
        %v1885 = vunpack.c.l.b16 %v1817
        %v1886 = vunpack.c.l.b16 %v1818
        %v1887 = vpack.c.b16 %v1856, %v1855
        %v1888 = vpack.c.b16 %v1858, %v1857
        %v1889 = vpack.c.b16 %v1860, %v1859
        %v1890 = vpack.c.b16 %v1862, %v1861
        %v1891 = vpack.c.b16 %v1864, %v1863
        %v1892 = vpack.c.b16 %v1866, %v1865
        %v1893 = vpack.c.b16 %v1868, %v1867
        %v1894 = vpack.c.b16 %v1870, %v1869
        %v1895 = vpack.c.b16 %v1872, %v1871
        %v1896 = vpack.c.b16 %v1874, %v1873
        %v1897 = vpack.c.b16 %v1876, %v1875
        %v1898 = vpack.c.b16 %v1878, %v1877
        %v1899 = vpack.c.b16 %v1880, %v1879
        %v1900 = vpack.c.b16 %v1882, %v1881
        %v1901 = vpack.c.b16 %v1884, %v1883
        %v1902 = vpack.c.b16 %v1886, %v1885
        %1919 = vmatprep.subr.bf16.mxu0 0
        %1920 = vmatpush1.bf16.msra.mxu0 %v1887
        %1921 = vmatprep.subr.bf16.mxu0 0
        %1922 = vmatpush1.bf16.msra.mxu0 %v1888
        %1923 = vmatprep.subr.bf16.mxu0 0
        %1924 = vmatpush1.bf16.msra.mxu0 %v1889
        %1925 = vmatprep.subr.bf16.mxu0 0
        %1926 = vmatpush1.bf16.msra.mxu0 %v1890
        %1927 = vmatprep.subr.bf16.mxu0 0
        %1928 = vmatpush1.bf16.msra.mxu0 %v1891
        %1929 = vmatprep.subr.bf16.mxu0 0
        %1930 = vmatpush1.bf16.msra.mxu0 %v1892
        %1931 = vmatprep.subr.bf16.mxu0 0
        %1932 = vmatpush1.bf16.msra.mxu0 %v1893
        %1933 = vmatprep.subr.bf16.mxu0 0
        %1934 = vmatpush1.bf16.msra.mxu0 %v1894
        %1935 = vmatprep.subr.bf16.mxu0 0
        %1936 = vmatpush1.bf16.msra.mxu0 %v1895
        %1937 = vmatprep.subr.bf16.mxu0 0
        %1938 = vmatpush1.bf16.msra.mxu0 %v1896
        %1939 = vmatprep.subr.bf16.mxu0 0
        %1940 = vmatpush1.bf16.msra.mxu0 %v1897
        %1941 = vmatprep.subr.bf16.mxu0 0
        %1942 = vmatpush1.bf16.msra.mxu0 %v1898
        %1943 = vmatprep.subr.bf16.mxu0 0
        %1944 = vmatpush1.bf16.msra.mxu0 %v1899
        %1945 = vmatprep.subr.bf16.mxu0 0
        %1946 = vmatpush1.bf16.msra.mxu0 %v1900
        %1947 = vmatprep.subr.bf16.mxu0 0
        %1948 = vmatpush1.bf16.msra.mxu0 %v1901
        %1949 = vmatprep.subr.bf16.mxu0 0
        %1950 = vmatpush1.bf16.msra.mxu0 %v1902
        %1951 = vmatprep.mubr.bf16.mxu0 %v1786
        %1952 = vmatmul.mubr.bf16.gmra.mrb[0].mxu0 %v1785
        %v1953 = vpop.f32.mrb[0].mxu0
        %v1954 = vadd.f32 %v1822, %v1953
        %v1955 = vpop.f32.mrb[0].mxu0
        %v1956 = vpop.f32.mrb[0].mxu0
        %v1957 = vpop.f32.mrb[0].mxu0
        %1958 = vdwg.mxu0
        %v1959 = vadd.f32 %v1632, %v1954
        %1960 = vadd.xlane.f32.xlu0 %v1959
        %v1961 = vpop.xlane.xlu0 %1960
        %v1962 = vmul.f32 %v1961, %v1135
        %v1963 = vsub.f32 %v1959, %v1962
        %v1964 = vmul.f32 %v1963, %v1963
        %1965 = vadd.xlane.f32.xlu0 %v1964
        %v1966 = vpop.xlane.xlu0 %1965
        %v1967 = vmul.f32 %v1966, %v1135
        %v1968 = vadd.f32 %v1967, 1e-05
        %v1969 = vrsqrt.pop %v1968
        %v1970 = vmul.f32 %v1963, %v1969
        %v1971 = vlaneseq
        %v1972 = vshrl.u32 %v1971, 7
        %v1973 = vsub.s32 7, %v1972
        %v1974 = vrot.slane %v539, %v1973
        %v1975 = vmul.f32 %v1970, %v1974
        %v1976 = vlaneseq
        %v1977 = vshrl.u32 %v1976, 7
        %v1978 = vsub.s32 0, %v1977
        %v1979 = vrot.slane %v540, %v1978
        %v1980 = vadd.f32 %v1975, %v1979
        %v1981 = vpack.c.bf16 %v1980, %v1980
        %v1982 = vld [vmem:[%s13] sm:$0xf]
        %v1983 = vld [vmem:[%s13 + $0x4] sm:$0xf]
        %v1984 = vld [vmem:[%s13 + $0x8] sm:$0xf]
        %v1985 = vld [vmem:[%s13 + $0xc] sm:$0xf]
        %v1986 = vld [vmem:[%s13 + $0x10] sm:$0xf]
        %v1987 = vld [vmem:[%s13 + $0x14] sm:$0xf]
        %v1988 = vld [vmem:[%s13 + $0x18] sm:$0xf]
        %v1989 = vld [vmem:[%s13 + $0x1c] sm:$0xf]
        %v1990 = vld [vmem:[%s13 + $0x20] sm:$0xf]
        %v1991 = vld [vmem:[%s13 + $0x24] sm:$0xf]
        %v1992 = vld [vmem:[%s13 + $0x28] sm:$0xf]
        %v1993 = vld [vmem:[%s13 + $0x2c] sm:$0xf]
        %v1994 = vld [vmem:[%s13 + $0x30] sm:$0xf]
        %v1995 = vld [vmem:[%s13 + $0x34] sm:$0xf]
        %v1996 = vld [vmem:[%s13 + $0x38] sm:$0xf]
        %v1997 = vld [vmem:[%s13 + $0x3c] sm:$0xf]
        %v1998 = vlaneseq
        %v1999 = vshrl.u32 %v1998, 7
        %v2000 = vsub.s32 2, %v1999
        %v2001 = vrot.slane %v539, %v2000
        %v2018 = vunpack.c.l.b16 %v1982
        %v2019 = vunpack.c.l.b16 %v1983
        %v2020 = vunpack.c.l.b16 %v1984
        %v2021 = vunpack.c.l.b16 %v1985
        %v2022 = vunpack.c.l.b16 %v1986
        %v2023 = vunpack.c.l.b16 %v1987
        %v2024 = vunpack.c.l.b16 %v1988
        %v2025 = vunpack.c.l.b16 %v1989
        %v2026 = vunpack.c.l.b16 %v1990
        %v2027 = vunpack.c.l.b16 %v1991
        %v2028 = vunpack.c.l.b16 %v1992
        %v2029 = vunpack.c.l.b16 %v1993
        %v2030 = vunpack.c.l.b16 %v1994
        %v2031 = vunpack.c.l.b16 %v1995
        %v2032 = vunpack.c.l.b16 %v1996
        %v2033 = vunpack.c.l.b16 %v1997
        %v2034 = vpack.c.b16 %v2019, %v2018
        %v2035 = vpack.c.b16 %v2021, %v2020
        %v2036 = vpack.c.b16 %v2023, %v2022
        %v2037 = vpack.c.b16 %v2025, %v2024
        %v2038 = vpack.c.b16 %v2027, %v2026
        %v2039 = vpack.c.b16 %v2029, %v2028
        %v2040 = vpack.c.b16 %v2031, %v2030
        %v2041 = vpack.c.b16 %v2033, %v2032
        %2050 = vmatprep.subr.bf16.mxu0 0
        %2051 = vmatpush1.bf16.msra.mxu0 %v2034
        %2052 = vmatprep.subr.bf16.mxu0 0
        %2053 = vmatpush1.bf16.msra.mxu0 %v2035
        %2054 = vmatprep.subr.bf16.mxu0 0
        %2055 = vmatpush1.bf16.msra.mxu0 %v2036
        %2056 = vmatprep.subr.bf16.mxu0 0
        %2057 = vmatpush1.bf16.msra.mxu0 %v2037
        %2058 = vmatprep.subr.bf16.mxu0 0
        %2059 = vmatpush1.bf16.msra.mxu0 %v2038
        %2060 = vmatprep.subr.bf16.mxu0 0
        %2061 = vmatpush1.bf16.msra.mxu0 %v2039
        %2062 = vmatprep.subr.bf16.mxu0 0
        %2063 = vmatpush1.bf16.msra.mxu0 %v2040
        %2064 = vmatprep.subr.bf16.mxu0 0
        %2065 = vmatpush1.bf16.msra.mxu0 %v2041
        %2066 = vmatprep.subr.bf16.mxu0 0
        %2067 = vmatpush1.bf16.msra.mxu0 0
        %2068 = vmatprep.subr.bf16.mxu0 0
        %2069 = vmatpush1.bf16.msra.mxu0 0
        %2070 = vmatprep.subr.bf16.mxu0 0
        %2071 = vmatpush1.bf16.msra.mxu0 0
        %2072 = vmatprep.subr.bf16.mxu0 0
        %2073 = vmatpush1.bf16.msra.mxu0 0
        %2074 = vmatprep.subr.bf16.mxu0 0
        %2075 = vmatpush1.bf16.msra.mxu0 0
        %2076 = vmatprep.subr.bf16.mxu0 0
        %2077 = vmatpush1.bf16.msra.mxu0 0
        %2078 = vmatprep.subr.bf16.mxu0 0
        %2079 = vmatpush1.bf16.msra.mxu0 0
        %2080 = vmatprep.subr.bf16.mxu0 0
        %2081 = vmatpush1.bf16.msra.mxu0 0
        %2082 = vmatprep.mubr.bf16.mxu0 0
        %2083 = vmatmul.mubr.bf16.gmra.mrb[0].mxu0 %v1981
        %v2084 = vpop.f32.mrb[0].mxu0
        %v2085 = vadd.f32 %v2001, %v2084
        %v2086 = vpop.f32.mrb[0].mxu0
        %v2087 = vpop.f32.mrb[0].mxu0
        %v2088 = vpop.f32.mrb[0].mxu0
        %2089 = vdwg.mxu0
        %2090 = vst [vmem:[%s522] sm:$0xff] %v2085
        %s2091 = sand.u32 %s372, 1
        %s2092 = scalar_lea.sflag [#allocation3], %s2091
        %s2093 = sand.u32 %s372, 1
        %s2094 = smul.addr %s2093, 8
        %s2095 = scalar_lea.vmem [#allocation2], %s2094
        // Predicated region
        $region81: #{rrg_forward.1} parent=79 // pred_check
          %p2096 = pneg %p382
        $region82: #{rrg_forward.1} parent=79 // pred_check_branch
          %2098 = sbr.rel (%p2096) target = $region84
        $region83: #{rrg_forward.1} parent=79 // pred_region
          %s2100 = ssub.s32 128, 128
          %2101 = vsyncadd %s2092, %s2100
          %s2102 = smul.addr %s29, 128
          %s2103 = scalar_lea.hbm %s15, %s2102
          %s2105 = sshll.u32 %s2095, 4
          %s2106 = int_to_ptr.vmem [resolvable:$true] %s2105
          %2108 = dma.vmem_to_hbm [thread:$0]  %s2106, 128, %s2103, %s2092
        $region84: #{rrg_forward.1} parent=79 // pred_fallthru
          _
      $region80: #{rrg_forward.1} parent=5 // pred_fallthru
        _
      %p2109 = scmp.le.s32.totalorder 2, %s24
      // Predicated region
      $region85: #{rrg_forward.1} parent=5 // pred_check
        %p2110 = pneg %p2109
      $region86: #{rrg_forward.1} parent=5 // pred_check_branch
        %2112 = sbr.rel (%p2110) target = $region88
      $region87: #{rrg_forward.1} parent=5 // pred_region
        %s2113 = ssub.s32 %s24, 2
        // Predicated region
        $region89: #{rrg_forward.1} parent=87 // pred_check
          %p2114 = pneg %p388
        $region90: #{rrg_forward.1} parent=87 // pred_check_branch
          %2116 = sbr.rel (%p2114) target = $region92
        $region91: #{rrg_forward.1} parent=87 // pred_region
          %s2117 = sand.u32 %s373, 1
          %s2118 = scalar_lea.sflag [#allocation3], %s2117
          %s2119 = sand.u32 %s373, 1
          %s2120 = smul.addr %s2119, 8
          %s2121 = scalar_lea.vmem [#allocation2], %s2120
          %2122 = dma.done %s2118, 128
        $region92: #{rrg_forward.1} parent=87 // pred_fallthru
          _
      $region88: #{rrg_forward.1} parent=5 // pred_fallthru
        _
    $region6: #{rrg_forward.1} parent=1 // loop_footer
      %s28 = sadd.s32 1, %s24
    $region7: #{rrg_forward.1} parent=1 // loop_footer_branch
      %23 = sbr.rel target = $region3
    $region8: #{rrg_forward.1} parent=1 // loop_exit
      _
    %2123 = vsyncpa [#allocation3], 1
    %s2124 = scalar_lea.sflag [#allocation3], 1
    %2125 = vsyncpa %s2124, 1

</llo_original>
